<compile_context>
chip_gen: v6e
topology: v6e:2x2x1
jax: 0.10.0
libtpu: 0.0.40
codegen_flags: <defaults>
</compile_context>

<pallas_src>
import jax
import jax.numpy as jnp
from jax import lax
from jax.experimental import pallas as pl
from jax.experimental.pallas import tpu as pltpu

LANES = 128                           # FC weight / output lane padding (lane-dense final store)
CONV_TM = 512                         # conv matmul row tile (multiple of 8; 512 ~ 85% HBM roofline)
FC_TM = 256                           # batch-row tile for the fused FC head
VMEM_LIMIT_BYTES = 32 * 1024 * 1024   # tiles above use < 4 MiB double-buffered; fits v5e/v6e/v7x


def _round_up(x, m):
    return (x + m - 1) // m * m


def _pad_last(x, n):
    pad = n - x.shape[-1]
    return x if pad == 0 else jnp.pad(x, [(0, 0)] * (x.ndim - 1) + [(0, pad)])


def _choose_tile(m, max_tile):
    """Sublane(8)-aligned row tile; prefer >=2 grid tiles so the 'parallel'
    grid axis can shard across v7x's two TensorCores and pipelining engages."""
    m8 = _round_up(m, 8)
    tm = min(max_tile, m8)
    if m8 > 8 and m8 // tm < 2:
        tm = _round_up((m8 + 1) // 2, 8)
    mp = _round_up(m, tm)
    return tm, mp


# ---------------------------------------------------------------------------
# Kernel 1: fused conv-as-matmul + bias + ReLU + 2x2 max-pool.
# p{0..3}_ref hold the (bf16) im2col patch rows for the four positions inside
# each 2x2 pooling window (all in pooled-output row order), so the pool is a
# pure element-wise max of four MXU results (f32 accumulation); bias + ReLU
# are applied once to the max (ReLU is monotone, bias is uniform across the
# window, so this matches pool(relu(conv + b))).
# ---------------------------------------------------------------------------
def _conv_relu_pool_kernel(p0_ref, p1_ref, p2_ref, p3_ref, w_ref, b_ref, o_ref):
    w = w_ref[...]
    acc = jnp.dot(p0_ref[...], w, preferred_element_type=jnp.float32)
    acc = jnp.maximum(acc, jnp.dot(p1_ref[...], w, preferred_element_type=jnp.float32))
    acc = jnp.maximum(acc, jnp.dot(p2_ref[...], w, preferred_element_type=jnp.float32))
    acc = jnp.maximum(acc, jnp.dot(p3_ref[...], w, preferred_element_type=jnp.float32))
    o_ref[...] = jnp.maximum(acc + b_ref[...], 0.0).astype(o_ref.dtype)


def conv_relu_pool(x_nhwc, w, b):
    """Conv2d(stride 1, VALID) + ReLU + MaxPool2d(2, 2).

    x_nhwc: (B, H, W, IC) float32 channel-last.  w: (OC, IC, KH, KW), b: (OC,).
    Returns (B, OH//2, OW//2, OC_pad) float32 with OC_pad = round_up(OC, 8).
    """
    OC, IC, KH, KW = w.shape
    B, H, W, C = x_nhwc.shape
    assert C == IC, (C, IC)
    OH, OW = H - KH + 1, W - KW + 1
    PH, PW = OH // 2, OW // 2          # MaxPool2d(2,2) floors odd edges, like PyTorch
    K = IC * KH * KW
    OC_pad = _round_up(OC, 8)

    M = B * PH * PW
    tm, Mp = _choose_tile(M, CONV_TM)

    # Cast the activation once; patch extraction with a 0/1 identity kernel is
    # exact in bf16, so this equals casting the patches themselves.
    x_bf = x_nhwc.astype(jnp.bfloat16)

    def quadrant(a, c):
        # Stride-2 patch extraction starting at offset (a, c): produces exactly
        # the im2col rows of pool-window position (a, c), in pooled-row order.
        # Feature order is (IC, KH, KW), matching PyTorch weight.reshape(OC, -1).
        q = lax.conv_general_dilated_patches(
            x_bf[:, a:, c:, :], (KH, KW), (2, 2), "VALID",
            dimension_numbers=("NHWC", "HWIO", "NHWC"))      # (B, >=PH, >=PW, K)
        q = q[:, :PH, :PW, :].reshape(M, K)
        return jnp.pad(q, ((0, Mp - M), (0, 0)))

    quads = [quadrant(0, 0), quadrant(0, 1), quadrant(1, 0), quadrant(1, 1)]

    wmat = _pad_last(w.reshape(OC, K).T, OC_pad).astype(jnp.bfloat16)   # (K, OC_pad)
    bvec = _pad_last(b, OC_pad).reshape(1, OC_pad)                      # f32

    cost = pl.CostEstimate(
        flops=2 * 4 * Mp * K * OC_pad,
        transcendentals=0,
        bytes_accessed=2 * (4 * Mp * K + K * OC_pad) + 4 * (Mp * OC_pad + OC_pad),
    )
    out = pl.pallas_call(
        _conv_relu_pool_kernel,
        out_shape=jax.ShapeDtypeStruct((Mp, OC_pad), jnp.float32),
        grid=(Mp // tm,),
        in_specs=[pl.BlockSpec((tm, K), lambda i: (i, 0)) for _ in range(4)]
        + [
            pl.BlockSpec((K, OC_pad), lambda i: (0, 0)),
            pl.BlockSpec((1, OC_pad), lambda i: (0, 0)),
        ],
        out_specs=pl.BlockSpec((tm, OC_pad), lambda i: (i, 0)),
        compiler_params=pltpu.CompilerParams(
            dimension_semantics=("parallel",),     # shards M tiles across v7x's 2 TCs
            vmem_limit_bytes=VMEM_LIMIT_BYTES,
        ),
        cost_estimate=cost,
    )(*quads, wmat, bvec)

    return out[:M].reshape(B, PH, PW, OC_pad)


# ---------------------------------------------------------------------------
# Kernel 2: fused FC head  relu(x@W1+b1) -> relu(.@W2+b2) -> .@W3+b3
# All three (zero-padded, 128-lane) weight matrices stay VMEM-resident; only
# the batch-row dimension is tiled.  Matmul operands bf16, accumulation f32.
# ---------------------------------------------------------------------------
def _fc_head_kernel(x_ref, w1_ref, b1_ref, w2_ref, b2_ref, w3_ref, b3_ref, o_ref):
    h = jnp.dot(x_ref[...], w1_ref[...], preferred_element_type=jnp.float32) + b1_ref[...]
    h = jnp.maximum(h, 0.0).astype(jnp.bfloat16)
    h = jnp.dot(h, w2_ref[...], preferred_element_type=jnp.float32) + b2_ref[...]
    h = jnp.maximum(h, 0.0).astype(jnp.bfloat16)
    o_ref[...] = (jnp.dot(h, w3_ref[...], preferred_element_type=jnp.float32)
                  + b3_ref[...]).astype(o_ref.dtype)


def fc_head(x, w1, b1, w2, b2, w3, b3):
    B, K1 = x.shape
    tm, Bp = _choose_tile(B, FC_TM)
    xp = jnp.pad(x, ((0, Bp - B), (0, 0))).astype(jnp.bfloat16)

    cost = pl.CostEstimate(
        flops=2 * Bp * (K1 + 2 * LANES) * LANES,
        transcendentals=0,
        bytes_accessed=2 * (Bp * K1 + K1 * LANES + 2 * LANES * LANES)
        + 4 * (Bp * LANES + 3 * LANES),
    )
    out = pl.pallas_call(
        _fc_head_kernel,
        out_shape=jax.ShapeDtypeStruct((Bp, LANES), jnp.float32),
        grid=(Bp // tm,),
        in_specs=[
            pl.BlockSpec((tm, K1), lambda i: (i, 0)),
            pl.BlockSpec((K1, LANES), lambda i: (0, 0)),
            pl.BlockSpec((1, LANES), lambda i: (0, 0)),
            pl.BlockSpec((LANES, LANES), lambda i: (0, 0)),
            pl.BlockSpec((1, LANES), lambda i: (0, 0)),
            pl.BlockSpec((LANES, LANES), lambda i: (0, 0)),
            pl.BlockSpec((1, LANES), lambda i: (0, 0)),
        ],
        out_specs=pl.BlockSpec((tm, LANES), lambda i: (i, 0)),
        compiler_params=pltpu.CompilerParams(
            dimension_semantics=("parallel",),
            vmem_limit_bytes=VMEM_LIMIT_BYTES,
        ),
        cost_estimate=cost,
    )(xp, w1, b1, w2, b2, w3, b3)
    return out[:B]


# ---------------------------------------------------------------------------
# Model: parameter init + forward
# ---------------------------------------------------------------------------
def init_params(key):
    """Conv weights (OC, IC, KH, KW); FC weights stored as (IN, OUT)
    (= PyTorch weight.T) with IN in PyTorch's (C, H, W) flatten order."""
    def uniform(key, shape, fan_in):
        bound = 1.0 / jnp.sqrt(jnp.asarray(fan_in, jnp.float32))
        return jax.random.uniform(key, shape, jnp.float32, -bound, bound)

    ks = jax.random.split(key, 10)
    return {
        "conv1_w": uniform(ks[0], (6, 3, 5, 5), 3 * 5 * 5),
        "conv1_b": uniform(ks[1], (6,), 3 * 5 * 5),
        "conv2_w": uniform(ks[2], (16, 6, 5, 5), 6 * 5 * 5),
        "conv2_b": uniform(ks[3], (16,), 6 * 5 * 5),
        "fc1_w": uniform(ks[4], (16 * 5 * 5, 120), 16 * 5 * 5),
        "fc1_b": uniform(ks[5], (120,), 16 * 5 * 5),
        "fc2_w": uniform(ks[6], (120, 84), 120),
        "fc2_b": uniform(ks[7], (84,), 120),
        "fc3_w": uniform(ks[8], (84, 10), 84),
        "fc3_b": uniform(ks[9], (10,), 84),
    }


def simple_cnn_forward(params, x):
    """x: (B, 3, 32, 32) NCHW float32 -> logits (B, 10)."""
    B = x.shape[0]
    x = jnp.transpose(x, (0, 2, 3, 1))                              # NCHW -> NHWC once, at the boundary

    a = conv_relu_pool(x, params["conv1_w"], params["conv1_b"])     # (B, 14, 14, 8)
    a = a[..., : params["conv1_w"].shape[0]]                        # (B, 14, 14, 6)  (cheap: 8->6)
    a = conv_relu_pool(a, params["conv2_w"], params["conv2_b"])     # (B, 5, 5, 16)

    # Free flatten: rows are already (b, h, w)-major with channels last.
    feat = a.reshape(B, 5 * 5 * 16)                                 # (B, 400)

    # fc1 weight: PyTorch (C,H,W)-ordered rows -> (H,W,C)-ordered rows matching `feat`.
    w1 = params["fc1_w"].reshape(16, 5, 5, 120).transpose(1, 2, 0, 3)     # (H, W, C, OUT)
    w1 = _pad_last(w1.reshape(400, 120), LANES).astype(jnp.bfloat16)      # (400, 128)
    b1 = _pad_last(params["fc1_b"], LANES).reshape(1, LANES)
    w2 = jnp.pad(params["fc2_w"],
                 ((0, LANES - 120), (0, LANES - 84))).astype(jnp.bfloat16)  # (128, 128)
    b2 = _pad_last(params["fc2_b"], LANES).reshape(1, LANES)
    w3 = jnp.pad(params["fc3_w"],
                 ((0, LANES - 84), (0, LANES - 10))).astype(jnp.bfloat16)   # (128, 128)
    b3 = _pad_last(params["fc3_b"], LANES).reshape(1, LANES)

    logits = fc_head(feat, w1, b1, w2, b2, w3, b3)                  # (B, 128)
    return logits[:, :10]


# ---------------------------------------------------------------------------
# Pure-JAX/XLA reference (no Pallas) for the built-in self-check.
# ---------------------------------------------------------------------------
def reference_forward(params, x):
    def conv(x, w, b):
        y = lax.conv_general_dilated(
            x, w, (1, 1), "VALID",
            dimension_numbers=("NCHW", "OIHW", "NCHW"),
            precision=lax.Precision.HIGHEST)
        return jnp.maximum(y + b[None, :, None, None], 0.0)

    def pool(x):
        return lax.reduce_window(x, -jnp.inf, lax.max, (1, 1, 2, 2), (1, 1, 2, 2), "VALID")

    a = pool(conv(x, params["conv1_w"], params["conv1_b"]))
    a = pool(conv(a, params["conv2_w"], params["conv2_b"]))
    a = a.reshape(a.shape[0], -1)
    hi = lax.Precision.HIGHEST
    a = jnp.maximum(jnp.dot(a, params["fc1_w"], precision=hi) + params["fc1_b"], 0.0)
    a = jnp.maximum(jnp.dot(a, params["fc2_w"], precision=hi) + params["fc2_b"], 0.0)
    return jnp.dot(a, params["fc3_w"], precision=hi) + params["fc3_b"]


if __name__ == "__main__":
    key = jax.random.PRNGKey(0)
    pkey, xkey = jax.random.split(key)
    params = init_params(pkey)
    # SimpleCNN's fc1 (16*5*5) implies 32x32 RGB input (CIFAR-like); small batch.
    x = jax.random.normal(xkey, (2, 3, 32, 32), dtype=jnp.float32)

    out = jax.jit(simple_cnn_forward)(params, x)
    jax.block_until_ready(out)
    assert out.shape == (2, 10), out.shape

    ref = jax.jit(reference_forward)(params, x)
    assert jnp.allclose(out, ref, atol=5e-2, rtol=5e-2), float(jnp.max(jnp.abs(out - ref)))

    print("KERNEL_OK")
</pallas_src>

<mosaic_0001>
module attributes {stable_mosaic.version = 11 : i64} {
  func.func @_conv_relu_pool_kernel(%arg0: i32, %arg1: memref<200x75xbf16, #tpu.memory_space<vmem>>, %arg2: memref<200x75xbf16, #tpu.memory_space<vmem>>, %arg3: memref<200x75xbf16, #tpu.memory_space<vmem>>, %arg4: memref<200x75xbf16, #tpu.memory_space<vmem>>, %arg5: memref<75x8xbf16, #tpu.memory_space<vmem>>, %arg6: memref<1x8xf32, #tpu.memory_space<vmem>>, %arg7: memref<200x8xf32, #tpu.memory_space<vmem>>) attributes {dimension_semantics = [#tpu.dimension_semantics<parallel>], iteration_bounds = array<i64: 2>, scalar_prefetch = 0 : i64, scratch_operands = 0 : i64, tpu.core_type = #tpu.core_type<tc>, window_params = [{transform_indices = @transform_0, window_bounds = array<i64: 200, 75>}, {transform_indices = @transform_1, window_bounds = array<i64: 200, 75>}, {transform_indices = @transform_2, window_bounds = array<i64: 200, 75>}, {transform_indices = @transform_3, window_bounds = array<i64: 200, 75>}, {pipeline_mode = #tpu.pipeline_mode<synchronous>, transform_indices = @transform_4, window_bounds = array<i64: 75, 8>}, {pipeline_mode = #tpu.pipeline_mode<synchronous>, transform_indices = @transform_5, window_bounds = array<i64: 1, 8>}, {transform_indices = @transform_6, window_bounds = array<i64: 200, 8>}]} {
    %c0 = arith.constant 0 : index
    %c0_0 = arith.constant 0 : index
    %0 = vector.load %arg5[%c0, %c0_0] : memref<75x8xbf16, #tpu.memory_space<vmem>>, vector<75x8xbf16>
    %c0_1 = arith.constant 0 : index
    %c0_2 = arith.constant 0 : index
    %1 = vector.load %arg1[%c0_1, %c0_2] : memref<200x75xbf16, #tpu.memory_space<vmem>>, vector<200x75xbf16>
    %cst = arith.constant dense<0.000000e+00> : vector<200x8xf32>
    %2 = tpu.matmul %1, %0, %cst {dimension_numbers = #tpu.dot_dimension_numbers<[1], [0], [0], [1], [0, 0, 1, 1], [], []>} : vector<200x75xbf16>, vector<75x8xbf16>, vector<200x8xf32> -> vector<200x8xf32>
    %c0_3 = arith.constant 0 : index
    %c0_4 = arith.constant 0 : index
    %3 = vector.load %arg2[%c0_3, %c0_4] : memref<200x75xbf16, #tpu.memory_space<vmem>>, vector<200x75xbf16>
    %cst_5 = arith.constant dense<0.000000e+00> : vector<200x8xf32>
    %4 = tpu.matmul %3, %0, %cst_5 {dimension_numbers = #tpu.dot_dimension_numbers<[1], [0], [0], [1], [0, 0, 1, 1], [], []>} : vector<200x75xbf16>, vector<75x8xbf16>, vector<200x8xf32> -> vector<200x8xf32>
    %5 = arith.maximumf %2, %4 : vector<200x8xf32>
    %c0_6 = arith.constant 0 : index
    %c0_7 = arith.constant 0 : index
    %6 = vector.load %arg3[%c0_6, %c0_7] : memref<200x75xbf16, #tpu.memory_space<vmem>>, vector<200x75xbf16>
    %cst_8 = arith.constant dense<0.000000e+00> : vector<200x8xf32>
    %7 = tpu.matmul %6, %0, %cst_8 {dimension_numbers = #tpu.dot_dimension_numbers<[1], [0], [0], [1], [0, 0, 1, 1], [], []>} : vector<200x75xbf16>, vector<75x8xbf16>, vector<200x8xf32> -> vector<200x8xf32>
    %8 = arith.maximumf %5, %7 : vector<200x8xf32>
    %c0_9 = arith.constant 0 : index
    %c0_10 = arith.constant 0 : index
    %9 = vector.load %arg4[%c0_9, %c0_10] : memref<200x75xbf16, #tpu.memory_space<vmem>>, vector<200x75xbf16>
    %cst_11 = arith.constant dense<0.000000e+00> : vector<200x8xf32>
    %10 = tpu.matmul %9, %0, %cst_11 {dimension_numbers = #tpu.dot_dimension_numbers<[1], [0], [0], [1], [0, 0, 1, 1], [], []>} : vector<200x75xbf16>, vector<75x8xbf16>, vector<200x8xf32> -> vector<200x8xf32>
    %11 = arith.maximumf %8, %10 : vector<200x8xf32>
    %c0_12 = arith.constant 0 : index
    %c0_13 = arith.constant 0 : index
    %12 = vector.load %arg6[%c0_12, %c0_13] : memref<1x8xf32, #tpu.memory_space<vmem>>, vector<1x8xf32>
    %13 = vector.broadcast %12 : vector<1x8xf32> to vector<200x8xf32>
    %14 = arith.addf %11, %13 : vector<200x8xf32>
    %cst_14 = arith.constant 0.000000e+00 : f32
    %15 = vector.broadcast %cst_14 : f32 to vector<200x8xf32>
    %16 = arith.maximumf %14, %15 : vector<200x8xf32>
    %c0_15 = arith.constant 0 : index
    %c0_16 = arith.constant 0 : index
    %17 = vector.load %arg7[%c0_15, %c0_16] : memref<200x8xf32, #tpu.memory_space<vmem>>, vector<200x8xf32>
    tpu.vector_store %arg7[%c0_15, %c0_16], %16 {strides = array<i32>} : memref<200x8xf32, #tpu.memory_space<vmem>>, vector<200x8xf32>,
    return
  }
  func.func @transform_0(%arg0: i32) -> (i32, i32) {
    %c0_i32 = arith.constant 0 : i32
    %c0_i32_0 = arith.constant 0 : i32
    return %arg0, %c0_i32 : i32, i32
  }
  func.func @transform_1(%arg0: i32) -> (i32, i32) {
    %c0_i32 = arith.constant 0 : i32
    %c0_i32_0 = arith.constant 0 : i32
    return %arg0, %c0_i32 : i32, i32
  }
  func.func @transform_2(%arg0: i32) -> (i32, i32) {
    %c0_i32 = arith.constant 0 : i32
    %c0_i32_0 = arith.constant 0 : i32
    return %arg0, %c0_i32 : i32, i32
  }
  func.func @transform_3(%arg0: i32) -> (i32, i32) {
    %c0_i32 = arith.constant 0 : i32
    %c0_i32_0 = arith.constant 0 : i32
    return %arg0, %c0_i32 : i32, i32
  }
  func.func @transform_4(%arg0: i32) -> (i32, i32) {
    %c0_i32 = arith.constant 0 : i32
    %c0_i32_0 = arith.constant 0 : i32
    %c0_i32_1 = arith.constant 0 : i32
    return %c0_i32, %c0_i32_0 : i32, i32
  }
  func.func @transform_5(%arg0: i32) -> (i32, i32) {
    %c0_i32 = arith.constant 0 : i32
    %c0_i32_0 = arith.constant 0 : i32
    %c0_i32_1 = arith.constant 0 : i32
    return %c0_i32, %c0_i32_0 : i32, i32
  }
  func.func @transform_6(%arg0: i32) -> (i32, i32) {
    %c0_i32 = arith.constant 0 : i32
    %c0_i32_0 = arith.constant 0 : i32
    return %arg0, %c0_i32 : i32, i32
  }
}

module attributes {stable_mosaic.version = 11 : i64} {
  func.func @_conv_relu_pool_kernel(%arg0: i32, %arg1: memref<32x150xbf16, #tpu.memory_space<vmem>>, %arg2: memref<32x150xbf16, #tpu.memory_space<vmem>>, %arg3: memref<32x150xbf16, #tpu.memory_space<vmem>>, %arg4: memref<32x150xbf16, #tpu.memory_space<vmem>>, %arg5: memref<150x16xbf16, #tpu.memory_space<vmem>>, %arg6: memref<1x16xf32, #tpu.memory_space<vmem>>, %arg7: memref<32x16xf32, #tpu.memory_space<vmem>>) attributes {dimension_semantics = [#tpu.dimension_semantics<parallel>], iteration_bounds = array<i64: 2>, scalar_prefetch = 0 : i64, scratch_operands = 0 : i64, tpu.core_type = #tpu.core_type<tc>, window_params = [{transform_indices = @transform_0, window_bounds = array<i64: 32, 150>}, {transform_indices = @transform_1, window_bounds = array<i64: 32, 150>}, {transform_indices = @transform_2, window_bounds = array<i64: 32, 150>}, {transform_indices = @transform_3, window_bounds = array<i64: 32, 150>}, {pipeline_mode = #tpu.pipeline_mode<synchronous>, transform_indices = @transform_4, window_bounds = array<i64: 150, 16>}, {pipeline_mode = #tpu.pipeline_mode<synchronous>, transform_indices = @transform_5, window_bounds = array<i64: 1, 16>}, {transform_indices = @transform_6, window_bounds = array<i64: 32, 16>}]} {
    %c0 = arith.constant 0 : index
    %c0_0 = arith.constant 0 : index
    %0 = vector.load %arg5[%c0, %c0_0] : memref<150x16xbf16, #tpu.memory_space<vmem>>, vector<150x16xbf16>
    %c0_1 = arith.constant 0 : index
    %c0_2 = arith.constant 0 : index
    %1 = vector.load %arg1[%c0_1, %c0_2] : memref<32x150xbf16, #tpu.memory_space<vmem>>, vector<32x150xbf16>
    %cst = arith.constant dense<0.000000e+00> : vector<32x16xf32>
    %2 = tpu.matmul %1, %0, %cst {dimension_numbers = #tpu.dot_dimension_numbers<[1], [0], [0], [1], [0, 0, 1, 1], [], []>} : vector<32x150xbf16>, vector<150x16xbf16>, vector<32x16xf32> -> vector<32x16xf32>
    %c0_3 = arith.constant 0 : index
    %c0_4 = arith.constant 0 : index
    %3 = vector.load %arg2[%c0_3, %c0_4] : memref<32x150xbf16, #tpu.memory_space<vmem>>, vector<32x150xbf16>
    %cst_5 = arith.constant dense<0.000000e+00> : vector<32x16xf32>
    %4 = tpu.matmul %3, %0, %cst_5 {dimension_numbers = #tpu.dot_dimension_numbers<[1], [0], [0], [1], [0, 0, 1, 1], [], []>} : vector<32x150xbf16>, vector<150x16xbf16>, vector<32x16xf32> -> vector<32x16xf32>
    %5 = arith.maximumf %2, %4 : vector<32x16xf32>
    %c0_6 = arith.constant 0 : index
    %c0_7 = arith.constant 0 : index
    %6 = vector.load %arg3[%c0_6, %c0_7] : memref<32x150xbf16, #tpu.memory_space<vmem>>, vector<32x150xbf16>
    %cst_8 = arith.constant dense<0.000000e+00> : vector<32x16xf32>
    %7 = tpu.matmul %6, %0, %cst_8 {dimension_numbers = #tpu.dot_dimension_numbers<[1], [0], [0], [1], [0, 0, 1, 1], [], []>} : vector<32x150xbf16>, vector<150x16xbf16>, vector<32x16xf32> -> vector<32x16xf32>
    %8 = arith.maximumf %5, %7 : vector<32x16xf32>
    %c0_9 = arith.constant 0 : index
    %c0_10 = arith.constant 0 : index
    %9 = vector.load %arg4[%c0_9, %c0_10] : memref<32x150xbf16, #tpu.memory_space<vmem>>, vector<32x150xbf16>
    %cst_11 = arith.constant dense<0.000000e+00> : vector<32x16xf32>
    %10 = tpu.matmul %9, %0, %cst_11 {dimension_numbers = #tpu.dot_dimension_numbers<[1], [0], [0], [1], [0, 0, 1, 1], [], []>} : vector<32x150xbf16>, vector<150x16xbf16>, vector<32x16xf32> -> vector<32x16xf32>
    %11 = arith.maximumf %8, %10 : vector<32x16xf32>
    %c0_12 = arith.constant 0 : index
    %c0_13 = arith.constant 0 : index
    %12 = vector.load %arg6[%c0_12, %c0_13] : memref<1x16xf32, #tpu.memory_space<vmem>>, vector<1x16xf32>
    %13 = vector.broadcast %12 : vector<1x16xf32> to vector<32x16xf32>
    %14 = arith.addf %11, %13 : vector<32x16xf32>
    %cst_14 = arith.constant 0.000000e+00 : f32
    %15 = vector.broadcast %cst_14 : f32 to vector<32x16xf32>
    %16 = arith.maximumf %14, %15 : vector<32x16xf32>
    %c0_15 = arith.constant 0 : index
    %c0_16 = arith.constant 0 : index
    %17 = vector.load %arg7[%c0_15, %c0_16] : memref<32x16xf32, #tpu.memory_space<vmem>>, vector<32x16xf32>
    tpu.vector_store %arg7[%c0_15, %c0_16], %16 {strides = array<i32>} : memref<32x16xf32, #tpu.memory_space<vmem>>, vector<32x16xf32>,
    return
  }
  func.func @transform_0(%arg0: i32) -> (i32, i32) {
    %c0_i32 = arith.constant 0 : i32
    %c0_i32_0 = arith.constant 0 : i32
    return %arg0, %c0_i32 : i32, i32
  }
  func.func @transform_1(%arg0: i32) -> (i32, i32) {
    %c0_i32 = arith.constant 0 : i32
    %c0_i32_0 = arith.constant 0 : i32
    return %arg0, %c0_i32 : i32, i32
  }
  func.func @transform_2(%arg0: i32) -> (i32, i32) {
    %c0_i32 = arith.constant 0 : i32
    %c0_i32_0 = arith.constant 0 : i32
    return %arg0, %c0_i32 : i32, i32
  }
  func.func @transform_3(%arg0: i32) -> (i32, i32) {
    %c0_i32 = arith.constant 0 : i32
    %c0_i32_0 = arith.constant 0 : i32
    return %arg0, %c0_i32 : i32, i32
  }
  func.func @transform_4(%arg0: i32) -> (i32, i32) {
    %c0_i32 = arith.constant 0 : i32
    %c0_i32_0 = arith.constant 0 : i32
    %c0_i32_1 = arith.constant 0 : i32
    return %c0_i32, %c0_i32_0 : i32, i32
  }
  func.func @transform_5(%arg0: i32) -> (i32, i32) {
    %c0_i32 = arith.constant 0 : i32
    %c0_i32_0 = arith.constant 0 : i32
    %c0_i32_1 = arith.constant 0 : i32
    return %c0_i32, %c0_i32_0 : i32, i32
  }
  func.func @transform_6(%arg0: i32) -> (i32, i32) {
    %c0_i32 = arith.constant 0 : i32
    %c0_i32_0 = arith.constant 0 : i32
    return %arg0, %c0_i32 : i32, i32
  }
}

module attributes {stable_mosaic.version = 11 : i64} {
  func.func @_fc_head_kernel(%arg0: i32, %arg1: memref<8x400xbf16, #tpu.memory_space<vmem>>, %arg2: memref<400x128xbf16, #tpu.memory_space<vmem>>, %arg3: memref<1x128xf32, #tpu.memory_space<vmem>>, %arg4: memref<128x128xbf16, #tpu.memory_space<vmem>>, %arg5: memref<1x128xf32, #tpu.memory_space<vmem>>, %arg6: memref<128x128xbf16, #tpu.memory_space<vmem>>, %arg7: memref<1x128xf32, #tpu.memory_space<vmem>>, %arg8: memref<8x128xf32, #tpu.memory_space<vmem>>) attributes {dimension_semantics = [#tpu.dimension_semantics<parallel>], iteration_bounds = array<i64: 1>, scalar_prefetch = 0 : i64, scratch_operands = 0 : i64, tpu.core_type = #tpu.core_type<tc>, window_params = [{transform_indices = @transform_0, window_bounds = array<i64: 8, 400>}, {pipeline_mode = #tpu.pipeline_mode<synchronous>, transform_indices = @transform_1, window_bounds = array<i64: 400, 128>}, {pipeline_mode = #tpu.pipeline_mode<synchronous>, transform_indices = @transform_2, window_bounds = array<i64: 1, 128>}, {pipeline_mode = #tpu.pipeline_mode<synchronous>, transform_indices = @transform_3, window_bounds = array<i64: 128, 128>}, {pipeline_mode = #tpu.pipeline_mode<synchronous>, transform_indices = @transform_4, window_bounds = array<i64: 1, 128>}, {pipeline_mode = #tpu.pipeline_mode<synchronous>, transform_indices = @transform_5, window_bounds = array<i64: 128, 128>}, {pipeline_mode = #tpu.pipeline_mode<synchronous>, transform_indices = @transform_6, window_bounds = array<i64: 1, 128>}, {transform_indices = @transform_7, window_bounds = array<i64: 8, 128>}]} {
    %c0 = arith.constant 0 : index
    %c0_0 = arith.constant 0 : index
    %0 = vector.load %arg1[%c0, %c0_0] : memref<8x400xbf16, #tpu.memory_space<vmem>>, vector<8x400xbf16>
    %c0_1 = arith.constant 0 : index
    %c0_2 = arith.constant 0 : index
    %1 = vector.load %arg2[%c0_1, %c0_2] : memref<400x128xbf16, #tpu.memory_space<vmem>>, vector<400x128xbf16>
    %cst = arith.constant dense<0.000000e+00> : vector<8x128xf32>
    %2 = tpu.matmul %0, %1, %cst {dimension_numbers = #tpu.dot_dimension_numbers<[1], [0], [0], [1], [0, 0, 1, 1], [], []>} : vector<8x400xbf16>, vector<400x128xbf16>, vector<8x128xf32> -> vector<8x128xf32>
    %c0_3 = arith.constant 0 : index
    %c0_4 = arith.constant 0 : index
    %3 = vector.load %arg3[%c0_3, %c0_4] : memref<1x128xf32, #tpu.memory_space<vmem>>, vector<1x128xf32>
    %4 = vector.broadcast %3 : vector<1x128xf32> to vector<8x128xf32>
    %5 = arith.addf %2, %4 : vector<8x128xf32>
    %cst_5 = arith.constant 0.000000e+00 : f32
    %6 = vector.broadcast %cst_5 : f32 to vector<8x128xf32>
    %7 = arith.maximumf %5, %6 : vector<8x128xf32>
    %8 = arith.truncf %7 : vector<8x128xf32> to vector<8x128xbf16>
    %c0_6 = arith.constant 0 : index
    %c0_7 = arith.constant 0 : index
    %9 = vector.load %arg4[%c0_6, %c0_7] : memref<128x128xbf16, #tpu.memory_space<vmem>>, vector<128x128xbf16>
    %cst_8 = arith.constant dense<0.000000e+00> : vector<8x128xf32>
    %10 = tpu.matmul %8, %9, %cst_8 {dimension_numbers = #tpu.dot_dimension_numbers<[1], [0], [0], [1], [0, 0, 1, 1], [], []>} : vector<8x128xbf16>, vector<128x128xbf16>, vector<8x128xf32> -> vector<8x128xf32>
    %c0_9 = arith.constant 0 : index
    %c0_10 = arith.constant 0 : index
    %11 = vector.load %arg5[%c0_9, %c0_10] : memref<1x128xf32, #tpu.memory_space<vmem>>, vector<1x128xf32>
    %12 = vector.broadcast %11 : vector<1x128xf32> to vector<8x128xf32>
    %13 = arith.addf %10, %12 : vector<8x128xf32>
    %cst_11 = arith.constant 0.000000e+00 : f32
    %14 = vector.broadcast %cst_11 : f32 to vector<8x128xf32>
    %15 = arith.maximumf %13, %14 : vector<8x128xf32>
    %16 = arith.truncf %15 : vector<8x128xf32> to vector<8x128xbf16>
    %c0_12 = arith.constant 0 : index
    %c0_13 = arith.constant 0 : index
    %17 = vector.load %arg6[%c0_12, %c0_13] : memref<128x128xbf16, #tpu.memory_space<vmem>>, vector<128x128xbf16>
    %cst_14 = arith.constant dense<0.000000e+00> : vector<8x128xf32>
    %18 = tpu.matmul %16, %17, %cst_14 {dimension_numbers = #tpu.dot_dimension_numbers<[1], [0], [0], [1], [0, 0, 1, 1], [], []>} : vector<8x128xbf16>, vector<128x128xbf16>, vector<8x128xf32> -> vector<8x128xf32>
    %c0_15 = arith.constant 0 : index
    %c0_16 = arith.constant 0 : index
    %19 = vector.load %arg7[%c0_15, %c0_16] : memref<1x128xf32, #tpu.memory_space<vmem>>, vector<1x128xf32>
    %20 = vector.broadcast %19 : vector<1x128xf32> to vector<8x128xf32>
    %21 = arith.addf %18, %20 : vector<8x128xf32>
    %c0_17 = arith.constant 0 : index
    %c0_18 = arith.constant 0 : index
    %22 = vector.load %arg8[%c0_17, %c0_18] : memref<8x128xf32, #tpu.memory_space<vmem>>, vector<8x128xf32>
    tpu.vector_store %arg8[%c0_17, %c0_18], %21 {strides = array<i32>} : memref<8x128xf32, #tpu.memory_space<vmem>>, vector<8x128xf32>,
    return
  }
  func.func @transform_0(%arg0: i32) -> (i32, i32) {
    %c0_i32 = arith.constant 0 : i32
    %c0_i32_0 = arith.constant 0 : i32
    return %arg0, %c0_i32 : i32, i32
  }
  func.func @transform_1(%arg0: i32) -> (i32, i32) {
    %c0_i32 = arith.constant 0 : i32
    %c0_i32_0 = arith.constant 0 : i32
    %c0_i32_1 = arith.constant 0 : i32
    return %c0_i32, %c0_i32_0 : i32, i32
  }
  func.func @transform_2(%arg0: i32) -> (i32, i32) {
    %c0_i32 = arith.constant 0 : i32
    %c0_i32_0 = arith.constant 0 : i32
    %c0_i32_1 = arith.constant 0 : i32
    return %c0_i32, %c0_i32_0 : i32, i32
  }
  func.func @transform_3(%arg0: i32) -> (i32, i32) {
    %c0_i32 = arith.constant 0 : i32
    %c0_i32_0 = arith.constant 0 : i32
    %c0_i32_1 = arith.constant 0 : i32
    return %c0_i32, %c0_i32_0 : i32, i32
  }
  func.func @transform_4(%arg0: i32) -> (i32, i32) {
    %c0_i32 = arith.constant 0 : i32
    %c0_i32_0 = arith.constant 0 : i32
    %c0_i32_1 = arith.constant 0 : i32
    return %c0_i32, %c0_i32_0 : i32, i32
  }
  func.func @transform_5(%arg0: i32) -> (i32, i32) {
    %c0_i32 = arith.constant 0 : i32
    %c0_i32_0 = arith.constant 0 : i32
    %c0_i32_1 = arith.constant 0 : i32
    return %c0_i32, %c0_i32_0 : i32, i32
  }
  func.func @transform_6(%arg0: i32) -> (i32, i32) {
    %c0_i32 = arith.constant 0 : i32
    %c0_i32_0 = arith.constant 0 : i32
    %c0_i32_1 = arith.constant 0 : i32
    return %c0_i32, %c0_i32_0 : i32, i32
  }
  func.func @transform_7(%arg0: i32) -> (i32, i32) {
    %c0_i32 = arith.constant 0 : i32
    %c0_i32_0 = arith.constant 0 : i32
    return %arg0, %c0_i32 : i32, i32
  }
}

</mosaic_0001>

<llo_original>
// kernel: simple_cnn_forward.3
$region0: #{simple_cnn_forward.3}
  #allocation0 [shape = 'u32[]', space=smem, size = 0x4, offset = 0x4, fixed_abs, tag = 'smem constant byte address 0x4 - core index']
  #allocation1 [shape = 'u32[144,128]{1,0:T(1,128)}', space=vmem, size = 0x12000, scoped, tag = 'internal scratch']
  %s0 = inlined_call_operand.vmem [shape: bf16[400,75], index: 0, kind: input, shape index: {}]
  %s1 = inlined_call_operand.vmem [shape: bf16[400,75], index: 1, kind: input, shape index: {}]
  %s2 = inlined_call_operand.vmem [shape: bf16[400,75], index: 2, kind: input, shape index: {}]
  %s3 = inlined_call_operand.vmem [shape: bf16[400,75], index: 3, kind: input, shape index: {}]
  %s4 = inlined_call_operand.vmem [shape: bf16[75,8], index: 4, kind: input, shape index: {}]
  %s5 = inlined_call_operand.vmem [shape: f32[1,8], index: 5, kind: input, shape index: {}]
  %s6 = inlined_call_operand.vmem [shape: f32[400,8], index: 6, kind: output, shape index: {}]
  %s7 = sld [smem:[#allocation0]]
  $region57: #{simple_cnn_forward.3} parent=0
    _
  %s9 = ssub.s32 1, %s7
  %s10 = scalar_select 0, %s9, %s7
  loop: start=0, step=1, limit=4
  $region2: #{simple_cnn_forward.3} parent=0 // loop_pre_header
    _
  $region3: #{simple_cnn_forward.3} parent=0 // loop_header
    %s12 = sphi 0, %s16
    %p13 = scmp.ge.s32.totalorder %s12, 4
    %s22 = sphi 0, %s24
    %s25 = sphi 0, %s22
    %s26 = sphi 0, %s25
    %s42 = sphi 0, %s26
    %s48 = sphi 0, %s50
    %s51 = sphi 0, %s48
    %s52 = sphi 0, %s51
    %s68 = sphi 0, %s52
    %s74 = sphi 0, %s76
    %s77 = sphi 0, %s74
    %s78 = sphi 0, %s77
    %s94 = sphi 0, %s78
    %s100 = sphi 0, %s102
    %s103 = sphi 0, %s100
    %s104 = sphi 0, %s103
    %s120 = sphi 0, %s104
    %s124 = sphi 0, %s124
    %s126 = sphi 0, %s124
    %s127 = sphi 0, %s126
    %s141 = sphi 0, %s127
    %s145 = sphi 0, %s145
    %s147 = sphi 0, %s145
    %s148 = sphi 0, %s147
    %s162 = sphi 0, %s148
    %s168 = sphi 0, %s170
    %s171 = sphi 0, %s168
    %s172 = sphi 0, %s171
    %s188 = sphi 0, %s172
  $region4: #{simple_cnn_forward.3} parent=0 // loop_header_branch
    %15 = sbr.rel (%p13) target = $region8
  $region5: #{simple_cnn_forward.3} parent=0 // loop_body
    %s17 = ssub.s32 %s12, 1
    %s18 = ssub.s32 %s12, 2
    %s19 = sadd.s32 %s12, 1
    %s20 = ssub.s32 %s12, %s19
    %p21 = scmp.eq.s32.totalorder %s20, 0
    %s23 = sadd.s32 %s22, 1
    %s24 = scalar_select %p21, %s22, %s23
    %p27 = pneg %p21
    %p28 = scmp.eq.s32.totalorder %s12, 1
    %p29 = por %p27, %p28
    %p30 = scmp.ne.s32.totalorder %s22, %s25
    %p31 = scmp.eq.s32.totalorder %s12, 0
    %p32 = por %p30, %p31
    %p33 = scmp.ne.s32.totalorder %s22, %s25
    %p34 = scmp.eq.s32.totalorder %s17, 1
    %p35 = por %p33, %p34
    %p36 = scmp.ne.s32.totalorder %s25, %s26
    %p37 = scmp.eq.s32.totalorder %s17, 0
    %p38 = por %p36, %p37
    %p39 = scmp.ne.s32.totalorder %s25, %s26
    %p40 = scmp.eq.s32.totalorder %s18, 1
    %p41 = por %p39, %p40
    %p43 = scmp.ne.s32.totalorder %s26, %s42
    %p44 = scmp.eq.s32.totalorder %s18, 0
    %p45 = por %p43, %p44
    %s46 = ssub.s32 %s12, %s19
    %p47 = scmp.eq.s32.totalorder %s46, 0
    %s49 = sadd.s32 %s48, 1
    %s50 = scalar_select %p47, %s48, %s49
    %p53 = pneg %p47
    %p54 = scmp.eq.s32.totalorder %s12, 1
    %p55 = por %p53, %p54
    %p56 = scmp.ne.s32.totalorder %s48, %s51
    %p57 = scmp.eq.s32.totalorder %s12, 0
    %p58 = por %p56, %p57
    %p59 = scmp.ne.s32.totalorder %s48, %s51
    %p60 = scmp.eq.s32.totalorder %s17, 1
    %p61 = por %p59, %p60
    %p62 = scmp.ne.s32.totalorder %s51, %s52
    %p63 = scmp.eq.s32.totalorder %s17, 0
    %p64 = por %p62, %p63
    %p65 = scmp.ne.s32.totalorder %s51, %s52
    %p66 = scmp.eq.s32.totalorder %s18, 1
    %p67 = por %p65, %p66
    %p69 = scmp.ne.s32.totalorder %s52, %s68
    %p70 = scmp.eq.s32.totalorder %s18, 0
    %p71 = por %p69, %p70
    %s72 = ssub.s32 %s12, %s19
    %p73 = scmp.eq.s32.totalorder %s72, 0
    %s75 = sadd.s32 %s74, 1
    %s76 = scalar_select %p73, %s74, %s75
    %p79 = pneg %p73
    %p80 = scmp.eq.s32.totalorder %s12, 1
    %p81 = por %p79, %p80
    %p82 = scmp.ne.s32.totalorder %s74, %s77
    %p83 = scmp.eq.s32.totalorder %s12, 0
    %p84 = por %p82, %p83
    %p85 = scmp.ne.s32.totalorder %s74, %s77
    %p86 = scmp.eq.s32.totalorder %s17, 1
    %p87 = por %p85, %p86
    %p88 = scmp.ne.s32.totalorder %s77, %s78
    %p89 = scmp.eq.s32.totalorder %s17, 0
    %p90 = por %p88, %p89
    %p91 = scmp.ne.s32.totalorder %s77, %s78
    %p92 = scmp.eq.s32.totalorder %s18, 1
    %p93 = por %p91, %p92
    %p95 = scmp.ne.s32.totalorder %s78, %s94
    %p96 = scmp.eq.s32.totalorder %s18, 0
    %p97 = por %p95, %p96
    %s98 = ssub.s32 %s12, %s19
    %p99 = scmp.eq.s32.totalorder %s98, 0
    %s101 = sadd.s32 %s100, 1
    %s102 = scalar_select %p99, %s100, %s101
    %p105 = pneg %p99
    %p106 = scmp.eq.s32.totalorder %s12, 1
    %p107 = por %p105, %p106
    %p108 = scmp.ne.s32.totalorder %s100, %s103
    %p109 = scmp.eq.s32.totalorder %s12, 0
    %p110 = por %p108, %p109
    %p111 = scmp.ne.s32.totalorder %s100, %s103
    %p112 = scmp.eq.s32.totalorder %s17, 1
    %p113 = por %p111, %p112
    %p114 = scmp.ne.s32.totalorder %s103, %s104
    %p115 = scmp.eq.s32.totalorder %s17, 0
    %p116 = por %p114, %p115
    %p117 = scmp.ne.s32.totalorder %s103, %s104
    %p118 = scmp.eq.s32.totalorder %s18, 1
    %p119 = por %p117, %p118
    %p121 = scmp.ne.s32.totalorder %s104, %s120
    %p122 = scmp.eq.s32.totalorder %s18, 0
    %p123 = por %p121, %p122
    %s125 = sadd.s32 %s124, 1
    %p128 = scmp.eq.s32.totalorder %s12, 1
    %p129 = scmp.ne.s32.totalorder %s124, %s126
    %p130 = scmp.eq.s32.totalorder %s12, 0
    %p131 = por %p129, %p130
    %p132 = scmp.ne.s32.totalorder %s124, %s126
    %p133 = scmp.eq.s32.totalorder %s17, 1
    %p134 = por %p132, %p133
    %p135 = scmp.ne.s32.totalorder %s126, %s127
    %p136 = scmp.eq.s32.totalorder %s17, 0
    %p137 = por %p135, %p136
    %p138 = scmp.ne.s32.totalorder %s126, %s127
    %p139 = scmp.eq.s32.totalorder %s18, 1
    %p140 = por %p138, %p139
    %p142 = scmp.ne.s32.totalorder %s127, %s141
    %p143 = scmp.eq.s32.totalorder %s18, 0
    %p144 = por %p142, %p143
    %s146 = sadd.s32 %s145, 1
    %p149 = scmp.eq.s32.totalorder %s12, 1
    %p150 = scmp.ne.s32.totalorder %s145, %s147
    %p151 = scmp.eq.s32.totalorder %s12, 0
    %p152 = por %p150, %p151
    %p153 = scmp.ne.s32.totalorder %s145, %s147
    %p154 = scmp.eq.s32.totalorder %s17, 1
    %p155 = por %p153, %p154
    %p156 = scmp.ne.s32.totalorder %s147, %s148
    %p157 = scmp.eq.s32.totalorder %s17, 0
    %p158 = por %p156, %p157
    %p159 = scmp.ne.s32.totalorder %s147, %s148
    %p160 = scmp.eq.s32.totalorder %s18, 1
    %p161 = por %p159, %p160
    %p163 = scmp.ne.s32.totalorder %s148, %s162
    %p164 = scmp.eq.s32.totalorder %s18, 0
    %p165 = por %p163, %p164
    %s166 = ssub.s32 %s12, %s19
    %p167 = scmp.eq.s32.totalorder %s166, 0
    %s169 = sadd.s32 %s168, 1
    %s170 = scalar_select %p167, %s168, %s169
    %p173 = pneg %p167
    %p174 = scmp.eq.s32.totalorder %s12, 1
    %p175 = por %p173, %p174
    %p176 = scmp.ne.s32.totalorder %s168, %s171
    %p177 = scmp.eq.s32.totalorder %s12, 0
    %p178 = por %p176, %p177
    %p179 = scmp.ne.s32.totalorder %s168, %s171
    %p180 = scmp.eq.s32.totalorder %s17, 1
    %p181 = por %p179, %p180
    %p182 = scmp.ne.s32.totalorder %s171, %s172
    %p183 = scmp.eq.s32.totalorder %s17, 0
    %p184 = por %p182, %p183
    %p185 = scmp.ne.s32.totalorder %s171, %s172
    %p186 = scmp.eq.s32.totalorder %s18, 1
    %p187 = por %p185, %p186
    %p189 = scmp.ne.s32.totalorder %s172, %s188
    %p190 = scmp.eq.s32.totalorder %s18, 0
    %p191 = por %p189, %p190
    %p192 = scmp.le.s32.totalorder 1, %s12
    %p193 = scmp.lt.s32.totalorder %s12, 3
    %p194 = pnand %p192, %p193
    %p195 = pneg %p194
    // Predicated region
    $region9: #{simple_cnn_forward.3} parent=5 // pred_check
      _
    $region10: #{simple_cnn_forward.3} parent=5 // pred_check_branch
      %197 = sbr.rel (%p194) target = $region12
    $region11: #{simple_cnn_forward.3} parent=5 // pred_region
      %s198 = ssub.s32 %s12, 1
      // Predicated region
      $region13: #{simple_cnn_forward.3} parent=11 // pred_check
        %p199 = pneg %p137
      $region14: #{simple_cnn_forward.3} parent=11 // pred_check_branch
        %201 = sbr.rel (%p199) target = $region16
      $region15: #{simple_cnn_forward.3} parent=11 // pred_region
        _
      $region16: #{simple_cnn_forward.3} parent=11 // pred_fallthru
        _
      // Predicated region
      $region17: #{simple_cnn_forward.3} parent=11 // pred_check
        %p202 = pneg %p158
      $region18: #{simple_cnn_forward.3} parent=11 // pred_check_branch
        %204 = sbr.rel (%p202) target = $region20
      $region19: #{simple_cnn_forward.3} parent=11 // pred_region
        _
      $region20: #{simple_cnn_forward.3} parent=11 // pred_fallthru
        _
    $region12: #{simple_cnn_forward.3} parent=5 // pred_fallthru
      _
    %p205 = scmp.lt.s32.totalorder %s12, 2
    // Predicated region
    $region21: #{simple_cnn_forward.3} parent=5 // pred_check
      %p206 = pneg %p205
    $region22: #{simple_cnn_forward.3} parent=5 // pred_check_branch
      %208 = sbr.rel (%p206) target = $region24
    $region23: #{simple_cnn_forward.3} parent=5 // pred_region
      // Predicated region
      $region25: #{simple_cnn_forward.3} parent=23 // pred_check
        %p209 = pneg %p32
      $region26: #{simple_cnn_forward.3} parent=23 // pred_check_branch
        %211 = sbr.rel (%p209) target = $region28
      $region27: #{simple_cnn_forward.3} parent=23 // pred_region
        %s212 = smul.u32 25, %s12
        %p213 = scmp.lt.s32.totalorder %s212, 49
        %s214 = scalar_select %p213, %s212, 49
        %s215 = smul.addr %s214, 4
        %s216 = scalar_lea.vmem %s0, %s215
        %s217 = smul.u32 25, %s12
      $region28: #{simple_cnn_forward.3} parent=23 // pred_fallthru
        _
      // Predicated region
      $region29: #{simple_cnn_forward.3} parent=23 // pred_check
        %p218 = pneg %p58
      $region30: #{simple_cnn_forward.3} parent=23 // pred_check_branch
        %220 = sbr.rel (%p218) target = $region32
      $region31: #{simple_cnn_forward.3} parent=23 // pred_region
        %s221 = smul.u32 25, %s12
        %p222 = scmp.lt.s32.totalorder %s221, 49
        %s223 = scalar_select %p222, %s221, 49
        %s224 = smul.addr %s223, 4
        %s225 = scalar_lea.vmem %s1, %s224
        %s226 = smul.u32 25, %s12
      $region32: #{simple_cnn_forward.3} parent=23 // pred_fallthru
        _
      // Predicated region
      $region33: #{simple_cnn_forward.3} parent=23 // pred_check
        %p227 = pneg %p84
      $region34: #{simple_cnn_forward.3} parent=23 // pred_check_branch
        %229 = sbr.rel (%p227) target = $region36
      $region35: #{simple_cnn_forward.3} parent=23 // pred_region
        %s230 = smul.u32 25, %s12
        %p231 = scmp.lt.s32.totalorder %s230, 49
        %s232 = scalar_select %p231, %s230, 49
        %s233 = smul.addr %s232, 4
        %s234 = scalar_lea.vmem %s2, %s233
        %s235 = smul.u32 25, %s12
      $region36: #{simple_cnn_forward.3} parent=23 // pred_fallthru
        _
      // Predicated region
      $region37: #{simple_cnn_forward.3} parent=23 // pred_check
        %p236 = pneg %p110
      $region38: #{simple_cnn_forward.3} parent=23 // pred_check_branch
        %238 = sbr.rel (%p236) target = $region40
      $region39: #{simple_cnn_forward.3} parent=23 // pred_region
        %s239 = smul.u32 25, %s12
        %p240 = scmp.lt.s32.totalorder %s239, 49
        %s241 = scalar_select %p240, %s239, 49
        %s242 = smul.addr %s241, 4
        %s243 = scalar_lea.vmem %s3, %s242
        %s244 = smul.u32 25, %s12
      $region40: #{simple_cnn_forward.3} parent=23 // pred_fallthru
        _
    $region24: #{simple_cnn_forward.3} parent=5 // pred_fallthru
      _
    %p245 = scmp.le.s32.totalorder 1, %s12
    %p246 = scmp.lt.s32.totalorder %s12, 3
    %p247 = pnand %p245, %p246
    %p248 = pneg %p247
    // Predicated region
    $region41: #{simple_cnn_forward.3} parent=5 // pred_check
      _
    $region42: #{simple_cnn_forward.3} parent=5 // pred_check_branch
      %250 = sbr.rel (%p247) target = $region44
    $region43: #{simple_cnn_forward.3} parent=5 // pred_region
      %s251 = ssub.s32 %s12, 1
      %s252 = smul.u32 25, %s17
      %p253 = scmp.lt.s32.totalorder %s252, 49
      %s254 = scalar_select %p253, %s252, 49
      %s255 = smul.addr %s254, 4
      %s256 = scalar_lea.vmem %s0, %s255
      %p257 = pneg %p38
      %p258 = pneg %p35
      %s259 = smul.u32 25, %s17
      %p260 = scmp.lt.s32.totalorder %s259, 49
      %s261 = scalar_select %p260, %s259, 49
      %s262 = smul.addr %s261, 4
      %s263 = scalar_lea.vmem %s1, %s262
      %p264 = pneg %p64
      %p265 = pneg %p61
      %s266 = smul.u32 25, %s17
      %p267 = scmp.lt.s32.totalorder %s266, 49
      %s268 = scalar_select %p267, %s266, 49
      %s269 = smul.addr %s268, 4
      %s270 = scalar_lea.vmem %s2, %s269
      %p271 = pneg %p90
      %p272 = pneg %p87
      %s273 = smul.u32 25, %s17
      %p274 = scmp.lt.s32.totalorder %s273, 49
      %s275 = scalar_select %p274, %s273, 49
      %s276 = smul.addr %s275, 4
      %s277 = scalar_lea.vmem %s3, %s276
      %p278 = pneg %p116
      %p279 = pneg %p113
      %p280 = pneg %p137
      %p281 = pneg %p134
      %p282 = pneg %p158
      %p283 = pneg %p155
      %p284 = pneg %p184
      %p285 = pneg %p181
      %s286 = smul.u32 25, %s17
      %p287 = scmp.lt.s32.totalorder %s286, 49
      %s288 = scalar_select %p287, %s286, 49
      %s289 = smul.addr %s288, 8
      %s290 = scalar_lea.vmem %s6, %s289
      %s291 = smul.u32 25, %s17
      %p292 = scmp.lt.s32.totalorder %s291, 49
      %s293 = scalar_select %p292, %s291, 49
      %s294 = smul.addr %s293, 4
      %s295 = scalar_lea.vmem %s0, %s294
      %s296 = smul.u32 25, %s17
      %s297 = smul.u32 25, %s17
      %p298 = scmp.lt.s32.totalorder %s297, 49
      %s299 = scalar_select %p298, %s297, 49
      %s300 = smul.addr %s299, 4
      %s301 = scalar_lea.vmem %s1, %s300
      %s302 = smul.u32 25, %s17
      %s303 = smul.u32 25, %s17
      %p304 = scmp.lt.s32.totalorder %s303, 49
      %s305 = scalar_select %p304, %s303, 49
      %s306 = smul.addr %s305, 4
      %s307 = scalar_lea.vmem %s2, %s306
      %s308 = smul.u32 25, %s17
      %s309 = smul.u32 25, %s17
      %p310 = scmp.lt.s32.totalorder %s309, 49
      %s311 = scalar_select %p310, %s309, 49
      %s312 = smul.addr %s311, 4
      %s313 = scalar_lea.vmem %s3, %s312
      %s314 = smul.u32 25, %s17
      %s315 = smul.u32 25, %s17
      %p316 = scmp.lt.s32.totalorder %s315, 49
      %s317 = scalar_select %p316, %s315, 49
      %s318 = smul.addr %s317, 8
      %s319 = scalar_lea.vmem %s6, %s318
      %s320 = smul.u32 25, %s17
      %v322 = vld [vmem:[%s4] sm:$0xf]
      %v323 = vld [vmem:[%s4 + $0x4] sm:$0xf]
      %v324 = vld [vmem:[%s4 + $0x8] sm:$0xf]
      %v325 = vld [vmem:[%s4 + $0xc] sm:$0xf]
      %v326 = vld [vmem:[%s4 + $0x10] sm:$0xf]
      %v327 = vld [vmem:[%s4 + $0x14] sm:$0xf]
      %v328 = vld [vmem:[%s4 + $0x18] sm:$0xf]
      %v329 = vld [vmem:[%s4 + $0x1c] sm:$0xf]
      %v330 = vld [vmem:[%s4 + $0x20] sm:$0xf]
      %v331 = vld [vmem:[%s4 + $0x24] sm:$0x3]
      %v332 = vld [vmem:[%s295] sm:$0xf]
      %v333 = vld [vmem:[%s295 + $0x4] sm:$0xf]
      %v334 = vld [vmem:[%s295 + $0x8] sm:$0xf]
      %v335 = vld [vmem:[%s295 + $0xc] sm:$0xf]
      %v336 = vld [vmem:[%s295 + $0x10] sm:$0xf]
      %v337 = vld [vmem:[%s295 + $0x14] sm:$0xf]
      %v338 = vld [vmem:[%s295 + $0x18] sm:$0xf]
      %v339 = vld [vmem:[%s295 + $0x1c] sm:$0xf]
      %v340 = vld [vmem:[%s295 + $0x20] sm:$0xf]
      %v341 = vld [vmem:[%s295 + $0x24] sm:$0xf]
      %v342 = vld [vmem:[%s295 + $0x28] sm:$0xf]
      %v343 = vld [vmem:[%s295 + $0x2c] sm:$0xf]
      %v344 = vld [vmem:[%s295 + $0x30] sm:$0xf]
      %v345 = vld [vmem:[%s295 + $0x34] sm:$0xf]
      %v346 = vld [vmem:[%s295 + $0x38] sm:$0xf]
      %v347 = vld [vmem:[%s295 + $0x3c] sm:$0xf]
      %v348 = vld [vmem:[%s295 + $0x40] sm:$0xf]
      %v349 = vld [vmem:[%s295 + $0x44] sm:$0xf]
      %v350 = vld [vmem:[%s295 + $0x48] sm:$0xf]
      %v351 = vld [vmem:[%s295 + $0x4c] sm:$0xf]
      %v352 = vld [vmem:[%s295 + $0x50] sm:$0xf]
      %v353 = vld [vmem:[%s295 + $0x54] sm:$0xf]
      %v354 = vld [vmem:[%s295 + $0x58] sm:$0xf]
      %v355 = vld [vmem:[%s295 + $0x5c] sm:$0xf]
      %v356 = vld [vmem:[%s295 + $0x60] sm:$0xf]
      %v382 = vunpack.c.l.b16 %v332
      %v383 = vunpack.c.l.b16 %v333
      %v384 = vunpack.c.l.b16 %v334
      %v385 = vunpack.c.l.b16 %v335
      %v386 = vunpack.c.l.b16 %v336
      %v387 = vunpack.c.l.b16 %v337
      %v388 = vunpack.c.l.b16 %v338
      %v389 = vunpack.c.l.b16 %v339
      %v390 = vunpack.c.l.b16 %v340
      %v391 = vunpack.c.l.b16 %v341
      %v392 = vunpack.c.l.b16 %v342
      %v393 = vunpack.c.l.b16 %v343
      %v394 = vunpack.c.l.b16 %v344
      %v395 = vunpack.c.l.b16 %v345
      %v396 = vunpack.c.l.b16 %v346
      %v397 = vunpack.c.l.b16 %v347
      %v398 = vunpack.c.l.b16 %v348
      %v399 = vunpack.c.l.b16 %v349
      %v400 = vunpack.c.l.b16 %v350
      %v401 = vunpack.c.l.b16 %v351
      %v402 = vunpack.c.l.b16 %v352
      %v403 = vunpack.c.l.b16 %v353
      %v404 = vunpack.c.l.b16 %v354
      %v405 = vunpack.c.l.b16 %v355
      %v406 = vunpack.c.l.b16 %v356
      %v407 = vpack.c.b16 %v383, %v382
      %v408 = vpack.c.b16 %v385, %v384
      %v409 = vpack.c.b16 %v387, %v386
      %v410 = vpack.c.b16 %v389, %v388
      %v411 = vpack.c.b16 %v391, %v390
      %v412 = vpack.c.b16 %v393, %v392
      %v413 = vpack.c.b16 %v395, %v394
      %v414 = vpack.c.b16 %v397, %v396
      %v415 = vpack.c.b16 %v399, %v398
      %v416 = vpack.c.b16 %v401, %v400
      %v417 = vpack.c.b16 %v403, %v402
      %v418 = vpack.c.b16 %v405, %v404
      %v419 = vpack.c.b16 %v406, %v406
      %v430 = vunpack.c.l.b16 %v322
      %v431 = vunpack.c.l.b16 %v323
      %v432 = vunpack.c.l.b16 %v324
      %v433 = vunpack.c.l.b16 %v325
      %v434 = vunpack.c.l.b16 %v326
      %v435 = vunpack.c.l.b16 %v327
      %v436 = vunpack.c.l.b16 %v328
      %v437 = vunpack.c.l.b16 %v329
      %v438 = vunpack.c.l.b16 %v330
      %v439 = vunpack.c.l.b16 %v331
      %v440 = vpack.c.b16 %v431, %v430
      %v441 = vpack.c.b16 %v433, %v432
      %v442 = vpack.c.b16 %v435, %v434
      %v443 = vpack.c.b16 %v437, %v436
      %v444 = vpack.c.b16 %v439, %v438
      %vm449 = vcmask 613376
      %v451 = vsel %vm449, %v407, 0
      %v454 = vsel %vm449, %v408, 0
      %v457 = vsel %vm449, %v409, 0
      %v460 = vsel %vm449, %v410, 0
      %v463 = vsel %vm449, %v411, 0
      %v466 = vsel %vm449, %v412, 0
      %v469 = vsel %vm449, %v413, 0
      %v472 = vsel %vm449, %v414, 0
      %v475 = vsel %vm449, %v415, 0
      %v478 = vsel %vm449, %v416, 0
      %v481 = vsel %vm449, %v417, 0
      %v484 = vsel %vm449, %v418, 0
      %v487 = vsel %vm449, %v419, 0
      %vm489 = vcmask 1044480
      %vm490 = vcmask 1045504
      %v491 = vsel %vm489, 4294967295, 65535
      %v492 = vsel %vm490, %v491, 0
      %v494 = vand.u32 %v444, %v492
      %496 = vmatprep.subr.bf16.mxu0 0
      %497 = vmatpush1.bf16.msra.mxu0 0
      %498 = vmatprep.subr.bf16.mxu0 0
      %499 = vmatpush1.bf16.msra.mxu0 0
      %500 = vmatprep.subr.bf16.mxu0 0
      %501 = vmatpush1.bf16.msra.mxu0 0
      %502 = vmatprep.subr.bf16.mxu0 0
      %503 = vmatpush1.bf16.msra.mxu0 %v494
      %504 = vmatprep.subr.bf16.mxu0 0
      %505 = vmatpush1.bf16.msra.mxu0 %v443
      %506 = vmatprep.subr.bf16.mxu0 0
      %507 = vmatpush1.bf16.msra.mxu0 %v442
      %508 = vmatprep.subr.bf16.mxu0 0
      %509 = vmatpush1.bf16.msra.mxu0 %v441
      %510 = vmatprep.subr.bf16.mxu0 0
      %511 = vmatpush1.bf16.msra.mxu0 %v440
      %512 = vmatprep.subr.bf16.mxu0 0
      %513 = vmatpush2.bf16.msra.mxu0 0
      %514 = vmatprep.subr.bf16.mxu0 0
      %515 = vmatpush2.bf16.msra.mxu0 0
      %516 = vmatprep.subr.bf16.mxu0 0
      %517 = vmatpush2.bf16.msra.mxu0 0
      %518 = vmatprep.subr.bf16.mxu0 0
      %519 = vmatpush2.bf16.msra.mxu0 0
      %520 = vmatprep.subr.bf16.mxu0 0
      %521 = vmatpush2.bf16.msra.mxu0 0
      %522 = vmatprep.subr.bf16.mxu0 0
      %523 = vmatpush2.bf16.msra.mxu0 0
      %524 = vmatprep.subr.bf16.mxu0 0
      %525 = vmatpush2.bf16.msra.mxu0 0
      %526 = vmatprep.subr.bf16.mxu0 0
      %527 = vmatpush2.bf16.msra.mxu0 0
      %528 = vmatprep.mubr.bf16.mxu0 0
      %529 = vmatmul.mubr.bf16.gmra.mxu0 %v451
      %v530 = vpop.f32.mrf.mxu0
      %v531 = vadd.f32 0.0, %v530
      %v532 = vpop.f32.mrf.mxu0
      %v533 = vpop.f32.mrf.mxu0
      %v534 = vadd.f32 0.0, %v533
      %v535 = vpop.f32.mrf.mxu0
      %536 = vmatprep.mubr.bf16.mxu0 0
      %537 = vmatmul.mubr.bf16.gmra.mxu0 %v454
      %v538 = vpop.f32.mrf.mxu0
      %v539 = vadd.f32 0.0, %v538
      %v540 = vpop.f32.mrf.mxu0
      %v541 = vpop.f32.mrf.mxu0
      %v542 = vadd.f32 0.0, %v541
      %v543 = vpop.f32.mrf.mxu0
      %544 = vmatprep.mubr.bf16.mxu0 0
      %545 = vmatmul.mubr.bf16.gmra.mxu0 %v457
      %v546 = vpop.f32.mrf.mxu0
      %v547 = vadd.f32 0.0, %v546
      %v548 = vpop.f32.mrf.mxu0
      %v549 = vpop.f32.mrf.mxu0
      %v550 = vadd.f32 0.0, %v549
      %v551 = vpop.f32.mrf.mxu0
      %552 = vmatprep.mubr.bf16.mxu0 0
      %553 = vmatmul.mubr.bf16.gmra.mxu0 %v460
      %v554 = vpop.f32.mrf.mxu0
      %v555 = vadd.f32 0.0, %v554
      %v556 = vpop.f32.mrf.mxu0
      %v557 = vpop.f32.mrf.mxu0
      %v558 = vadd.f32 0.0, %v557
      %v559 = vpop.f32.mrf.mxu0
      %560 = vmatprep.mubr.bf16.mxu0 0
      %561 = vmatmul.mubr.bf16.gmra.mxu0 %v463
      %v562 = vpop.f32.mrf.mxu0
      %v563 = vadd.f32 0.0, %v562
      %v564 = vpop.f32.mrf.mxu0
      %v565 = vpop.f32.mrf.mxu0
      %v566 = vadd.f32 0.0, %v565
      %v567 = vpop.f32.mrf.mxu0
      %568 = vmatprep.mubr.bf16.mxu0 0
      %569 = vmatmul.mubr.bf16.gmra.mxu0 %v466
      %v570 = vpop.f32.mrf.mxu0
      %v571 = vadd.f32 0.0, %v570
      %v572 = vpop.f32.mrf.mxu0
      %v573 = vpop.f32.mrf.mxu0
      %v574 = vadd.f32 0.0, %v573
      %v575 = vpop.f32.mrf.mxu0
      %576 = vmatprep.mubr.bf16.mxu0 0
      %577 = vmatmul.mubr.bf16.gmra.mxu0 %v469
      %v578 = vpop.f32.mrf.mxu0
      %v579 = vadd.f32 0.0, %v578
      %v580 = vpop.f32.mrf.mxu0
      %v581 = vpop.f32.mrf.mxu0
      %v582 = vadd.f32 0.0, %v581
      %v583 = vpop.f32.mrf.mxu0
      %584 = vmatprep.mubr.bf16.mxu0 0
      %585 = vmatmul.mubr.bf16.gmra.mxu0 %v472
      %v586 = vpop.f32.mrf.mxu0
      %v587 = vadd.f32 0.0, %v586
      %v588 = vpop.f32.mrf.mxu0
      %v589 = vpop.f32.mrf.mxu0
      %v590 = vadd.f32 0.0, %v589
      %v591 = vpop.f32.mrf.mxu0
      %592 = vmatprep.mubr.bf16.mxu0 0
      %593 = vmatmul.mubr.bf16.gmra.mxu0 %v475
      %v594 = vpop.f32.mrf.mxu0
      %v595 = vadd.f32 0.0, %v594
      %v596 = vpop.f32.mrf.mxu0
      %v597 = vpop.f32.mrf.mxu0
      %v598 = vadd.f32 0.0, %v597
      %v599 = vpop.f32.mrf.mxu0
      %600 = vmatprep.mubr.bf16.mxu0 0
      %601 = vmatmul.mubr.bf16.gmra.mxu0 %v478
      %v602 = vpop.f32.mrf.mxu0
      %v603 = vadd.f32 0.0, %v602
      %v604 = vpop.f32.mrf.mxu0
      %v605 = vpop.f32.mrf.mxu0
      %v606 = vadd.f32 0.0, %v605
      %v607 = vpop.f32.mrf.mxu0
      %608 = vmatprep.mubr.bf16.mxu0 0
      %609 = vmatmul.mubr.bf16.gmra.mxu0 %v481
      %v610 = vpop.f32.mrf.mxu0
      %v611 = vadd.f32 0.0, %v610
      %v612 = vpop.f32.mrf.mxu0
      %v613 = vpop.f32.mrf.mxu0
      %v614 = vadd.f32 0.0, %v613
      %v615 = vpop.f32.mrf.mxu0
      %616 = vmatprep.mubr.bf16.mxu0 0
      %617 = vmatmul.mubr.bf16.gmra.mxu0 %v484
      %v618 = vpop.f32.mrf.mxu0
      %v619 = vadd.f32 0.0, %v618
      %v620 = vpop.f32.mrf.mxu0
      %v621 = vpop.f32.mrf.mxu0
      %v622 = vadd.f32 0.0, %v621
      %v623 = vpop.f32.mrf.mxu0
      %624 = vmatprep.mubr.bf16.mxu0 0
      %625 = vmatmul.mubr.bf16.gmra.mxu0 %v487
      %v626 = vpop.f32.mrf.mxu0
      %v627 = vadd.f32 0.0, %v626
      %v628 = vpop.f32.mrf.mxu0
      %v629 = vpop.f32.mrf.mxu0
      %v630 = vpop.f32.mrf.mxu0
      %631 = vdwg.mxu0
      %v632 = vld [vmem:[%s301] sm:$0xf]
      %v633 = vld [vmem:[%s301 + $0x4] sm:$0xf]
      %v634 = vld [vmem:[%s301 + $0x8] sm:$0xf]
      %v635 = vld [vmem:[%s301 + $0xc] sm:$0xf]
      %v636 = vld [vmem:[%s301 + $0x10] sm:$0xf]
      %v637 = vld [vmem:[%s301 + $0x14] sm:$0xf]
      %v638 = vld [vmem:[%s301 + $0x18] sm:$0xf]
      %v639 = vld [vmem:[%s301 + $0x1c] sm:$0xf]
      %v640 = vld [vmem:[%s301 + $0x20] sm:$0xf]
      %v641 = vld [vmem:[%s301 + $0x24] sm:$0xf]
      %v642 = vld [vmem:[%s301 + $0x28] sm:$0xf]
      %v643 = vld [vmem:[%s301 + $0x2c] sm:$0xf]
      %v644 = vld [vmem:[%s301 + $0x30] sm:$0xf]
      %v645 = vld [vmem:[%s301 + $0x34] sm:$0xf]
      %v646 = vld [vmem:[%s301 + $0x38] sm:$0xf]
      %v647 = vld [vmem:[%s301 + $0x3c] sm:$0xf]
      %v648 = vld [vmem:[%s301 + $0x40] sm:$0xf]
      %v649 = vld [vmem:[%s301 + $0x44] sm:$0xf]
      %v650 = vld [vmem:[%s301 + $0x48] sm:$0xf]
      %v651 = vld [vmem:[%s301 + $0x4c] sm:$0xf]
      %v652 = vld [vmem:[%s301 + $0x50] sm:$0xf]
      %v653 = vld [vmem:[%s301 + $0x54] sm:$0xf]
      %v654 = vld [vmem:[%s301 + $0x58] sm:$0xf]
      %v655 = vld [vmem:[%s301 + $0x5c] sm:$0xf]
      %v656 = vld [vmem:[%s301 + $0x60] sm:$0xf]
      %v682 = vunpack.c.l.b16 %v632
      %v683 = vunpack.c.l.b16 %v633
      %v684 = vunpack.c.l.b16 %v634
      %v685 = vunpack.c.l.b16 %v635
      %v686 = vunpack.c.l.b16 %v636
      %v687 = vunpack.c.l.b16 %v637
      %v688 = vunpack.c.l.b16 %v638
      %v689 = vunpack.c.l.b16 %v639
      %v690 = vunpack.c.l.b16 %v640
      %v691 = vunpack.c.l.b16 %v641
      %v692 = vunpack.c.l.b16 %v642
      %v693 = vunpack.c.l.b16 %v643
      %v694 = vunpack.c.l.b16 %v644
      %v695 = vunpack.c.l.b16 %v645
      %v696 = vunpack.c.l.b16 %v646
      %v697 = vunpack.c.l.b16 %v647
      %v698 = vunpack.c.l.b16 %v648
      %v699 = vunpack.c.l.b16 %v649
      %v700 = vunpack.c.l.b16 %v650
      %v701 = vunpack.c.l.b16 %v651
      %v702 = vunpack.c.l.b16 %v652
      %v703 = vunpack.c.l.b16 %v653
      %v704 = vunpack.c.l.b16 %v654
      %v705 = vunpack.c.l.b16 %v655
      %v706 = vunpack.c.l.b16 %v656
      %v707 = vpack.c.b16 %v683, %v682
      %v708 = vpack.c.b16 %v685, %v684
      %v709 = vpack.c.b16 %v687, %v686
      %v710 = vpack.c.b16 %v689, %v688
      %v711 = vpack.c.b16 %v691, %v690
      %v712 = vpack.c.b16 %v693, %v692
      %v713 = vpack.c.b16 %v695, %v694
      %v714 = vpack.c.b16 %v697, %v696
      %v715 = vpack.c.b16 %v699, %v698
      %v716 = vpack.c.b16 %v701, %v700
      %v717 = vpack.c.b16 %v703, %v702
      %v718 = vpack.c.b16 %v705, %v704
      %v719 = vpack.c.b16 %v706, %v706
      %v721 = vsel %vm449, %v707, 0
      %v724 = vsel %vm449, %v708, 0
      %v727 = vsel %vm449, %v709, 0
      %v730 = vsel %vm449, %v710, 0
      %v733 = vsel %vm449, %v711, 0
      %v736 = vsel %vm449, %v712, 0
      %v739 = vsel %vm449, %v713, 0
      %v742 = vsel %vm449, %v714, 0
      %v745 = vsel %vm449, %v715, 0
      %v748 = vsel %vm449, %v716, 0
      %v751 = vsel %vm449, %v717, 0
      %v754 = vsel %vm449, %v718, 0
      %v757 = vsel %vm449, %v719, 0
      %759 = vmatprep.subr.bf16.mxu0 0
      %760 = vmatpush1.bf16.msra.mxu0 0
      %761 = vmatprep.subr.bf16.mxu0 0
      %762 = vmatpush1.bf16.msra.mxu0 0
      %763 = vmatprep.subr.bf16.mxu0 0
      %764 = vmatpush1.bf16.msra.mxu0 0
      %765 = vmatprep.subr.bf16.mxu0 0
      %766 = vmatpush1.bf16.msra.mxu0 %v494
      %767 = vmatprep.subr.bf16.mxu0 0
      %768 = vmatpush1.bf16.msra.mxu0 %v443
      %769 = vmatprep.subr.bf16.mxu0 0
      %770 = vmatpush1.bf16.msra.mxu0 %v442
      %771 = vmatprep.subr.bf16.mxu0 0
      %772 = vmatpush1.bf16.msra.mxu0 %v441
      %773 = vmatprep.subr.bf16.mxu0 0
      %774 = vmatpush1.bf16.msra.mxu0 %v440
      %775 = vmatprep.subr.bf16.mxu0 0
      %776 = vmatpush2.bf16.msra.mxu0 0
      %777 = vmatprep.subr.bf16.mxu0 0
      %778 = vmatpush2.bf16.msra.mxu0 0
      %779 = vmatprep.subr.bf16.mxu0 0
      %780 = vmatpush2.bf16.msra.mxu0 0
      %781 = vmatprep.subr.bf16.mxu0 0
      %782 = vmatpush2.bf16.msra.mxu0 0
      %783 = vmatprep.subr.bf16.mxu0 0
      %784 = vmatpush2.bf16.msra.mxu0 0
      %785 = vmatprep.subr.bf16.mxu0 0
      %786 = vmatpush2.bf16.msra.mxu0 0
      %787 = vmatprep.subr.bf16.mxu0 0
      %788 = vmatpush2.bf16.msra.mxu0 0
      %789 = vmatprep.subr.bf16.mxu0 0
      %790 = vmatpush2.bf16.msra.mxu0 0
      %791 = vmatprep.mubr.bf16.mxu0 0
      %792 = vmatmul.mubr.bf16.gmra.mxu0 %v721
      %v793 = vpop.f32.mrf.mxu0
      %v794 = vadd.f32 0.0, %v793
      %v795 = vpop.f32.mrf.mxu0
      %v796 = vpop.f32.mrf.mxu0
      %v797 = vadd.f32 0.0, %v796
      %v798 = vpop.f32.mrf.mxu0
      %799 = vmatprep.mubr.bf16.mxu0 0
      %800 = vmatmul.mubr.bf16.gmra.mxu0 %v724
      %v801 = vpop.f32.mrf.mxu0
      %v802 = vadd.f32 0.0, %v801
      %v803 = vpop.f32.mrf.mxu0
      %v804 = vpop.f32.mrf.mxu0
      %v805 = vadd.f32 0.0, %v804
      %v806 = vpop.f32.mrf.mxu0
      %807 = vmatprep.mubr.bf16.mxu0 0
      %808 = vmatmul.mubr.bf16.gmra.mxu0 %v727
      %v809 = vpop.f32.mrf.mxu0
      %v810 = vadd.f32 0.0, %v809
      %v811 = vpop.f32.mrf.mxu0
      %v812 = vpop.f32.mrf.mxu0
      %v813 = vadd.f32 0.0, %v812
      %v814 = vpop.f32.mrf.mxu0
      %815 = vmatprep.mubr.bf16.mxu0 0
      %816 = vmatmul.mubr.bf16.gmra.mxu0 %v730
      %v817 = vpop.f32.mrf.mxu0
      %v818 = vadd.f32 0.0, %v817
      %v819 = vpop.f32.mrf.mxu0
      %v820 = vpop.f32.mrf.mxu0
      %v821 = vadd.f32 0.0, %v820
      %v822 = vpop.f32.mrf.mxu0
      %823 = vmatprep.mubr.bf16.mxu0 0
      %824 = vmatmul.mubr.bf16.gmra.mxu0 %v733
      %v825 = vpop.f32.mrf.mxu0
      %v826 = vadd.f32 0.0, %v825
      %v827 = vpop.f32.mrf.mxu0
      %v828 = vpop.f32.mrf.mxu0
      %v829 = vadd.f32 0.0, %v828
      %v830 = vpop.f32.mrf.mxu0
      %831 = vmatprep.mubr.bf16.mxu0 0
      %832 = vmatmul.mubr.bf16.gmra.mxu0 %v736
      %v833 = vpop.f32.mrf.mxu0
      %v834 = vadd.f32 0.0, %v833
      %v835 = vpop.f32.mrf.mxu0
      %v836 = vpop.f32.mrf.mxu0
      %v837 = vadd.f32 0.0, %v836
      %v838 = vpop.f32.mrf.mxu0
      %839 = vmatprep.mubr.bf16.mxu0 0
      %840 = vmatmul.mubr.bf16.gmra.mxu0 %v739
      %v841 = vpop.f32.mrf.mxu0
      %v842 = vadd.f32 0.0, %v841
      %v843 = vpop.f32.mrf.mxu0
      %v844 = vpop.f32.mrf.mxu0
      %v845 = vadd.f32 0.0, %v844
      %v846 = vpop.f32.mrf.mxu0
      %847 = vmatprep.mubr.bf16.mxu0 0
      %848 = vmatmul.mubr.bf16.gmra.mxu0 %v742
      %v849 = vpop.f32.mrf.mxu0
      %v850 = vadd.f32 0.0, %v849
      %v851 = vpop.f32.mrf.mxu0
      %v852 = vpop.f32.mrf.mxu0
      %v853 = vadd.f32 0.0, %v852
      %v854 = vpop.f32.mrf.mxu0
      %855 = vmatprep.mubr.bf16.mxu0 0
      %856 = vmatmul.mubr.bf16.gmra.mxu0 %v745
      %v857 = vpop.f32.mrf.mxu0
      %v858 = vadd.f32 0.0, %v857
      %v859 = vpop.f32.mrf.mxu0
      %v860 = vpop.f32.mrf.mxu0
      %v861 = vadd.f32 0.0, %v860
      %v862 = vpop.f32.mrf.mxu0
      %863 = vmatprep.mubr.bf16.mxu0 0
      %864 = vmatmul.mubr.bf16.gmra.mxu0 %v748
      %v865 = vpop.f32.mrf.mxu0
      %v866 = vadd.f32 0.0, %v865
      %v867 = vpop.f32.mrf.mxu0
      %v868 = vpop.f32.mrf.mxu0
      %v869 = vadd.f32 0.0, %v868
      %v870 = vpop.f32.mrf.mxu0
      %871 = vmatprep.mubr.bf16.mxu0 0
      %872 = vmatmul.mubr.bf16.gmra.mxu0 %v751
      %v873 = vpop.f32.mrf.mxu0
      %v874 = vadd.f32 0.0, %v873
      %v875 = vpop.f32.mrf.mxu0
      %v876 = vpop.f32.mrf.mxu0
      %v877 = vadd.f32 0.0, %v876
      %v878 = vpop.f32.mrf.mxu0
      %879 = vmatprep.mubr.bf16.mxu0 0
      %880 = vmatmul.mubr.bf16.gmra.mxu0 %v754
      %v881 = vpop.f32.mrf.mxu0
      %v882 = vadd.f32 0.0, %v881
      %v883 = vpop.f32.mrf.mxu0
      %v884 = vpop.f32.mrf.mxu0
      %v885 = vadd.f32 0.0, %v884
      %v886 = vpop.f32.mrf.mxu0
      %887 = vmatprep.mubr.bf16.mxu0 0
      %888 = vmatmul.mubr.bf16.gmra.mxu0 %v757
      %v889 = vpop.f32.mrf.mxu0
      %v890 = vadd.f32 0.0, %v889
      %v891 = vpop.f32.mrf.mxu0
      %v892 = vpop.f32.mrf.mxu0
      %v893 = vpop.f32.mrf.mxu0
      %894 = vdwg.mxu0
      %v895 = vmax.f32 %v531, %v794
      %v896 = vmax.f32 %v534, %v797
      %v897 = vmax.f32 %v539, %v802
      %v898 = vmax.f32 %v542, %v805
      %v899 = vmax.f32 %v547, %v810
      %v900 = vmax.f32 %v550, %v813
      %v901 = vmax.f32 %v555, %v818
      %v902 = vmax.f32 %v558, %v821
      %v903 = vmax.f32 %v563, %v826
      %v904 = vmax.f32 %v566, %v829
      %v905 = vmax.f32 %v571, %v834
      %v906 = vmax.f32 %v574, %v837
      %v907 = vmax.f32 %v579, %v842
      %v908 = vmax.f32 %v582, %v845
      %v909 = vmax.f32 %v587, %v850
      %v910 = vmax.f32 %v590, %v853
      %v911 = vmax.f32 %v595, %v858
      %v912 = vmax.f32 %v598, %v861
      %v913 = vmax.f32 %v603, %v866
      %v914 = vmax.f32 %v606, %v869
      %v915 = vmax.f32 %v611, %v874
      %v916 = vmax.f32 %v614, %v877
      %v917 = vmax.f32 %v619, %v882
      %v918 = vmax.f32 %v622, %v885
      %v919 = vmax.f32 %v627, %v890
      %v920 = vld [vmem:[%s307] sm:$0xf]
      %v921 = vld [vmem:[%s307 + $0x4] sm:$0xf]
      %v922 = vld [vmem:[%s307 + $0x8] sm:$0xf]
      %v923 = vld [vmem:[%s307 + $0xc] sm:$0xf]
      %v924 = vld [vmem:[%s307 + $0x10] sm:$0xf]
      %v925 = vld [vmem:[%s307 + $0x14] sm:$0xf]
      %v926 = vld [vmem:[%s307 + $0x18] sm:$0xf]
      %v927 = vld [vmem:[%s307 + $0x1c] sm:$0xf]
      %v928 = vld [vmem:[%s307 + $0x20] sm:$0xf]
      %v929 = vld [vmem:[%s307 + $0x24] sm:$0xf]
      %v930 = vld [vmem:[%s307 + $0x28] sm:$0xf]
      %v931 = vld [vmem:[%s307 + $0x2c] sm:$0xf]
      %v932 = vld [vmem:[%s307 + $0x30] sm:$0xf]
      %v933 = vld [vmem:[%s307 + $0x34] sm:$0xf]
      %v934 = vld [vmem:[%s307 + $0x38] sm:$0xf]
      %v935 = vld [vmem:[%s307 + $0x3c] sm:$0xf]
      %v936 = vld [vmem:[%s307 + $0x40] sm:$0xf]
      %v937 = vld [vmem:[%s307 + $0x44] sm:$0xf]
      %v938 = vld [vmem:[%s307 + $0x48] sm:$0xf]
      %v939 = vld [vmem:[%s307 + $0x4c] sm:$0xf]
      %v940 = vld [vmem:[%s307 + $0x50] sm:$0xf]
      %v941 = vld [vmem:[%s307 + $0x54] sm:$0xf]
      %v942 = vld [vmem:[%s307 + $0x58] sm:$0xf]
      %v943 = vld [vmem:[%s307 + $0x5c] sm:$0xf]
      %v944 = vld [vmem:[%s307 + $0x60] sm:$0xf]
      %v970 = vunpack.c.l.b16 %v920
      %v971 = vunpack.c.l.b16 %v921
      %v972 = vunpack.c.l.b16 %v922
      %v973 = vunpack.c.l.b16 %v923
      %v974 = vunpack.c.l.b16 %v924
      %v975 = vunpack.c.l.b16 %v925
      %v976 = vunpack.c.l.b16 %v926
      %v977 = vunpack.c.l.b16 %v927
      %v978 = vunpack.c.l.b16 %v928
      %v979 = vunpack.c.l.b16 %v929
      %v980 = vunpack.c.l.b16 %v930
      %v981 = vunpack.c.l.b16 %v931
      %v982 = vunpack.c.l.b16 %v932
      %v983 = vunpack.c.l.b16 %v933
      %v984 = vunpack.c.l.b16 %v934
      %v985 = vunpack.c.l.b16 %v935
      %v986 = vunpack.c.l.b16 %v936
      %v987 = vunpack.c.l.b16 %v937
      %v988 = vunpack.c.l.b16 %v938
      %v989 = vunpack.c.l.b16 %v939
      %v990 = vunpack.c.l.b16 %v940
      %v991 = vunpack.c.l.b16 %v941
      %v992 = vunpack.c.l.b16 %v942
      %v993 = vunpack.c.l.b16 %v943
      %v994 = vunpack.c.l.b16 %v944
      %v995 = vpack.c.b16 %v971, %v970
      %v996 = vpack.c.b16 %v973, %v972
      %v997 = vpack.c.b16 %v975, %v974
      %v998 = vpack.c.b16 %v977, %v976
      %v999 = vpack.c.b16 %v979, %v978
      %v1000 = vpack.c.b16 %v981, %v980
      %v1001 = vpack.c.b16 %v983, %v982
      %v1002 = vpack.c.b16 %v985, %v984
      %v1003 = vpack.c.b16 %v987, %v986
      %v1004 = vpack.c.b16 %v989, %v988
      %v1005 = vpack.c.b16 %v991, %v990
      %v1006 = vpack.c.b16 %v993, %v992
      %v1007 = vpack.c.b16 %v994, %v994
      %v1009 = vsel %vm449, %v995, 0
      %v1012 = vsel %vm449, %v996, 0
      %v1015 = vsel %vm449, %v997, 0
      %v1018 = vsel %vm449, %v998, 0
      %v1021 = vsel %vm449, %v999, 0
      %v1024 = vsel %vm449, %v1000, 0
      %v1027 = vsel %vm449, %v1001, 0
      %v1030 = vsel %vm449, %v1002, 0
      %v1033 = vsel %vm449, %v1003, 0
      %v1036 = vsel %vm449, %v1004, 0
      %v1039 = vsel %vm449, %v1005, 0
      %v1042 = vsel %vm449, %v1006, 0
      %v1045 = vsel %vm449, %v1007, 0
      %1047 = vmatprep.subr.bf16.mxu0 0
      %1048 = vmatpush1.bf16.msra.mxu0 0
      %1049 = vmatprep.subr.bf16.mxu0 0
      %1050 = vmatpush1.bf16.msra.mxu0 0
      %1051 = vmatprep.subr.bf16.mxu0 0
      %1052 = vmatpush1.bf16.msra.mxu0 0
      %1053 = vmatprep.subr.bf16.mxu0 0
      %1054 = vmatpush1.bf16.msra.mxu0 %v494
      %1055 = vmatprep.subr.bf16.mxu0 0
      %1056 = vmatpush1.bf16.msra.mxu0 %v443
      %1057 = vmatprep.subr.bf16.mxu0 0
      %1058 = vmatpush1.bf16.msra.mxu0 %v442
      %1059 = vmatprep.subr.bf16.mxu0 0
      %1060 = vmatpush1.bf16.msra.mxu0 %v441
      %1061 = vmatprep.subr.bf16.mxu0 0
      %1062 = vmatpush1.bf16.msra.mxu0 %v440
      %1063 = vmatprep.subr.bf16.mxu0 0
      %1064 = vmatpush2.bf16.msra.mxu0 0
      %1065 = vmatprep.subr.bf16.mxu0 0
      %1066 = vmatpush2.bf16.msra.mxu0 0
      %1067 = vmatprep.subr.bf16.mxu0 0
      %1068 = vmatpush2.bf16.msra.mxu0 0
      %1069 = vmatprep.subr.bf16.mxu0 0
      %1070 = vmatpush2.bf16.msra.mxu0 0
      %1071 = vmatprep.subr.bf16.mxu0 0
      %1072 = vmatpush2.bf16.msra.mxu0 0
      %1073 = vmatprep.subr.bf16.mxu0 0
      %1074 = vmatpush2.bf16.msra.mxu0 0
      %1075 = vmatprep.subr.bf16.mxu0 0
      %1076 = vmatpush2.bf16.msra.mxu0 0
      %1077 = vmatprep.subr.bf16.mxu0 0
      %1078 = vmatpush2.bf16.msra.mxu0 0
      %1079 = vmatprep.mubr.bf16.mxu0 0
      %1080 = vmatmul.mubr.bf16.gmra.mxu0 %v1009
      %v1081 = vpop.f32.mrf.mxu0
      %v1082 = vadd.f32 0.0, %v1081
      %v1083 = vpop.f32.mrf.mxu0
      %v1084 = vpop.f32.mrf.mxu0
      %v1085 = vadd.f32 0.0, %v1084
      %v1086 = vpop.f32.mrf.mxu0
      %1087 = vmatprep.mubr.bf16.mxu0 0
      %1088 = vmatmul.mubr.bf16.gmra.mxu0 %v1012
      %v1089 = vpop.f32.mrf.mxu0
      %v1090 = vadd.f32 0.0, %v1089
      %v1091 = vpop.f32.mrf.mxu0
      %v1092 = vpop.f32.mrf.mxu0
      %v1093 = vadd.f32 0.0, %v1092
      %v1094 = vpop.f32.mrf.mxu0
      %1095 = vmatprep.mubr.bf16.mxu0 0
      %1096 = vmatmul.mubr.bf16.gmra.mxu0 %v1015
      %v1097 = vpop.f32.mrf.mxu0
      %v1098 = vadd.f32 0.0, %v1097
      %v1099 = vpop.f32.mrf.mxu0
      %v1100 = vpop.f32.mrf.mxu0
      %v1101 = vadd.f32 0.0, %v1100
      %v1102 = vpop.f32.mrf.mxu0
      %1103 = vmatprep.mubr.bf16.mxu0 0
      %1104 = vmatmul.mubr.bf16.gmra.mxu0 %v1018
      %v1105 = vpop.f32.mrf.mxu0
      %v1106 = vadd.f32 0.0, %v1105
      %v1107 = vpop.f32.mrf.mxu0
      %v1108 = vpop.f32.mrf.mxu0
      %v1109 = vadd.f32 0.0, %v1108
      %v1110 = vpop.f32.mrf.mxu0
      %1111 = vmatprep.mubr.bf16.mxu0 0
      %1112 = vmatmul.mubr.bf16.gmra.mxu0 %v1021
      %v1113 = vpop.f32.mrf.mxu0
      %v1114 = vadd.f32 0.0, %v1113
      %v1115 = vpop.f32.mrf.mxu0
      %v1116 = vpop.f32.mrf.mxu0
      %v1117 = vadd.f32 0.0, %v1116
      %v1118 = vpop.f32.mrf.mxu0
      %1119 = vmatprep.mubr.bf16.mxu0 0
      %1120 = vmatmul.mubr.bf16.gmra.mxu0 %v1024
      %v1121 = vpop.f32.mrf.mxu0
      %v1122 = vadd.f32 0.0, %v1121
      %v1123 = vpop.f32.mrf.mxu0
      %v1124 = vpop.f32.mrf.mxu0
      %v1125 = vadd.f32 0.0, %v1124
      %v1126 = vpop.f32.mrf.mxu0
      %1127 = vmatprep.mubr.bf16.mxu0 0
      %1128 = vmatmul.mubr.bf16.gmra.mxu0 %v1027
      %v1129 = vpop.f32.mrf.mxu0
      %v1130 = vadd.f32 0.0, %v1129
      %v1131 = vpop.f32.mrf.mxu0
      %v1132 = vpop.f32.mrf.mxu0
      %v1133 = vadd.f32 0.0, %v1132
      %v1134 = vpop.f32.mrf.mxu0
      %1135 = vmatprep.mubr.bf16.mxu0 0
      %1136 = vmatmul.mubr.bf16.gmra.mxu0 %v1030
      %v1137 = vpop.f32.mrf.mxu0
      %v1138 = vadd.f32 0.0, %v1137
      %v1139 = vpop.f32.mrf.mxu0
      %v1140 = vpop.f32.mrf.mxu0
      %v1141 = vadd.f32 0.0, %v1140
      %v1142 = vpop.f32.mrf.mxu0
      %1143 = vmatprep.mubr.bf16.mxu0 0
      %1144 = vmatmul.mubr.bf16.gmra.mxu0 %v1033
      %v1145 = vpop.f32.mrf.mxu0
      %v1146 = vadd.f32 0.0, %v1145
      %v1147 = vpop.f32.mrf.mxu0
      %v1148 = vpop.f32.mrf.mxu0
      %v1149 = vadd.f32 0.0, %v1148
      %v1150 = vpop.f32.mrf.mxu0
      %1151 = vmatprep.mubr.bf16.mxu0 0
      %1152 = vmatmul.mubr.bf16.gmra.mxu0 %v1036
      %v1153 = vpop.f32.mrf.mxu0
      %v1154 = vadd.f32 0.0, %v1153
      %v1155 = vpop.f32.mrf.mxu0
      %v1156 = vpop.f32.mrf.mxu0
      %v1157 = vadd.f32 0.0, %v1156
      %v1158 = vpop.f32.mrf.mxu0
      %1159 = vmatprep.mubr.bf16.mxu0 0
      %1160 = vmatmul.mubr.bf16.gmra.mxu0 %v1039
      %v1161 = vpop.f32.mrf.mxu0
      %v1162 = vadd.f32 0.0, %v1161
      %v1163 = vpop.f32.mrf.mxu0
      %v1164 = vpop.f32.mrf.mxu0
      %v1165 = vadd.f32 0.0, %v1164
      %v1166 = vpop.f32.mrf.mxu0
      %1167 = vmatprep.mubr.bf16.mxu0 0
      %1168 = vmatmul.mubr.bf16.gmra.mxu0 %v1042
      %v1169 = vpop.f32.mrf.mxu0
      %v1170 = vadd.f32 0.0, %v1169
      %v1171 = vpop.f32.mrf.mxu0
      %v1172 = vpop.f32.mrf.mxu0
      %v1173 = vadd.f32 0.0, %v1172
      %v1174 = vpop.f32.mrf.mxu0
      %1175 = vmatprep.mubr.bf16.mxu0 0
      %1176 = vmatmul.mubr.bf16.gmra.mxu0 %v1045
      %v1177 = vpop.f32.mrf.mxu0
      %v1178 = vadd.f32 0.0, %v1177
      %v1179 = vpop.f32.mrf.mxu0
      %v1180 = vpop.f32.mrf.mxu0
      %v1181 = vpop.f32.mrf.mxu0
      %1182 = vdwg.mxu0
      %v1183 = vmax.f32 %v895, %v1082
      %v1184 = vmax.f32 %v896, %v1085
      %v1185 = vmax.f32 %v897, %v1090
      %v1186 = vmax.f32 %v898, %v1093
      %v1187 = vmax.f32 %v899, %v1098
      %v1188 = vmax.f32 %v900, %v1101
      %v1189 = vmax.f32 %v901, %v1106
      %v1190 = vmax.f32 %v902, %v1109
      %v1191 = vmax.f32 %v903, %v1114
      %v1192 = vmax.f32 %v904, %v1117
      %v1193 = vmax.f32 %v905, %v1122
      %v1194 = vmax.f32 %v906, %v1125
      %v1195 = vmax.f32 %v907, %v1130
      %v1196 = vmax.f32 %v908, %v1133
      %v1197 = vmax.f32 %v909, %v1138
      %v1198 = vmax.f32 %v910, %v1141
      %v1199 = vmax.f32 %v911, %v1146
      %v1200 = vmax.f32 %v912, %v1149
      %v1201 = vmax.f32 %v913, %v1154
      %v1202 = vmax.f32 %v914, %v1157
      %v1203 = vmax.f32 %v915, %v1162
      %v1204 = vmax.f32 %v916, %v1165
      %v1205 = vmax.f32 %v917, %v1170
      %v1206 = vmax.f32 %v918, %v1173
      %v1207 = vmax.f32 %v919, %v1178
      %v1208 = vld [vmem:[%s313] sm:$0xf]
      %v1209 = vld [vmem:[%s313 + $0x4] sm:$0xf]
      %v1210 = vld [vmem:[%s313 + $0x8] sm:$0xf]
      %v1211 = vld [vmem:[%s313 + $0xc] sm:$0xf]
      %v1212 = vld [vmem:[%s313 + $0x10] sm:$0xf]
      %v1213 = vld [vmem:[%s313 + $0x14] sm:$0xf]
      %v1214 = vld [vmem:[%s313 + $0x18] sm:$0xf]
      %v1215 = vld [vmem:[%s313 + $0x1c] sm:$0xf]
      %v1216 = vld [vmem:[%s313 + $0x20] sm:$0xf]
      %v1217 = vld [vmem:[%s313 + $0x24] sm:$0xf]
      %v1218 = vld [vmem:[%s313 + $0x28] sm:$0xf]
      %v1219 = vld [vmem:[%s313 + $0x2c] sm:$0xf]
      %v1220 = vld [vmem:[%s313 + $0x30] sm:$0xf]
      %v1221 = vld [vmem:[%s313 + $0x34] sm:$0xf]
      %v1222 = vld [vmem:[%s313 + $0x38] sm:$0xf]
      %v1223 = vld [vmem:[%s313 + $0x3c] sm:$0xf]
      %v1224 = vld [vmem:[%s313 + $0x40] sm:$0xf]
      %v1225 = vld [vmem:[%s313 + $0x44] sm:$0xf]
      %v1226 = vld [vmem:[%s313 + $0x48] sm:$0xf]
      %v1227 = vld [vmem:[%s313 + $0x4c] sm:$0xf]
      %v1228 = vld [vmem:[%s313 + $0x50] sm:$0xf]
      %v1229 = vld [vmem:[%s313 + $0x54] sm:$0xf]
      %v1230 = vld [vmem:[%s313 + $0x58] sm:$0xf]
      %v1231 = vld [vmem:[%s313 + $0x5c] sm:$0xf]
      %v1232 = vld [vmem:[%s313 + $0x60] sm:$0xf]
      %v1258 = vunpack.c.l.b16 %v1208
      %v1259 = vunpack.c.l.b16 %v1209
      %v1260 = vunpack.c.l.b16 %v1210
      %v1261 = vunpack.c.l.b16 %v1211
      %v1262 = vunpack.c.l.b16 %v1212
      %v1263 = vunpack.c.l.b16 %v1213
      %v1264 = vunpack.c.l.b16 %v1214
      %v1265 = vunpack.c.l.b16 %v1215
      %v1266 = vunpack.c.l.b16 %v1216
      %v1267 = vunpack.c.l.b16 %v1217
      %v1268 = vunpack.c.l.b16 %v1218
      %v1269 = vunpack.c.l.b16 %v1219
      %v1270 = vunpack.c.l.b16 %v1220
      %v1271 = vunpack.c.l.b16 %v1221
      %v1272 = vunpack.c.l.b16 %v1222
      %v1273 = vunpack.c.l.b16 %v1223
      %v1274 = vunpack.c.l.b16 %v1224
      %v1275 = vunpack.c.l.b16 %v1225
      %v1276 = vunpack.c.l.b16 %v1226
      %v1277 = vunpack.c.l.b16 %v1227
      %v1278 = vunpack.c.l.b16 %v1228
      %v1279 = vunpack.c.l.b16 %v1229
      %v1280 = vunpack.c.l.b16 %v1230
      %v1281 = vunpack.c.l.b16 %v1231
      %v1282 = vunpack.c.l.b16 %v1232
      %v1283 = vpack.c.b16 %v1259, %v1258
      %v1284 = vpack.c.b16 %v1261, %v1260
      %v1285 = vpack.c.b16 %v1263, %v1262
      %v1286 = vpack.c.b16 %v1265, %v1264
      %v1287 = vpack.c.b16 %v1267, %v1266
      %v1288 = vpack.c.b16 %v1269, %v1268
      %v1289 = vpack.c.b16 %v1271, %v1270
      %v1290 = vpack.c.b16 %v1273, %v1272
      %v1291 = vpack.c.b16 %v1275, %v1274
      %v1292 = vpack.c.b16 %v1277, %v1276
      %v1293 = vpack.c.b16 %v1279, %v1278
      %v1294 = vpack.c.b16 %v1281, %v1280
      %v1295 = vpack.c.b16 %v1282, %v1282
      %v1297 = vsel %vm449, %v1283, 0
      %v1300 = vsel %vm449, %v1284, 0
      %v1303 = vsel %vm449, %v1285, 0
      %v1306 = vsel %vm449, %v1286, 0
      %v1309 = vsel %vm449, %v1287, 0
      %v1312 = vsel %vm449, %v1288, 0
      %v1315 = vsel %vm449, %v1289, 0
      %v1318 = vsel %vm449, %v1290, 0
      %v1321 = vsel %vm449, %v1291, 0
      %v1324 = vsel %vm449, %v1292, 0
      %v1327 = vsel %vm449, %v1293, 0
      %v1330 = vsel %vm449, %v1294, 0
      %v1333 = vsel %vm449, %v1295, 0
      %1335 = vmatprep.subr.bf16.mxu0 0
      %1336 = vmatpush1.bf16.msra.mxu0 0
      %1337 = vmatprep.subr.bf16.mxu0 0
      %1338 = vmatpush1.bf16.msra.mxu0 0
      %1339 = vmatprep.subr.bf16.mxu0 0
      %1340 = vmatpush1.bf16.msra.mxu0 0
      %1341 = vmatprep.subr.bf16.mxu0 0
      %1342 = vmatpush1.bf16.msra.mxu0 %v494
      %1343 = vmatprep.subr.bf16.mxu0 0
      %1344 = vmatpush1.bf16.msra.mxu0 %v443
      %1345 = vmatprep.subr.bf16.mxu0 0
      %1346 = vmatpush1.bf16.msra.mxu0 %v442
      %1347 = vmatprep.subr.bf16.mxu0 0
      %1348 = vmatpush1.bf16.msra.mxu0 %v441
      %1349 = vmatprep.subr.bf16.mxu0 0
      %1350 = vmatpush1.bf16.msra.mxu0 %v440
      %1351 = vmatprep.subr.bf16.mxu0 0
      %1352 = vmatpush2.bf16.msra.mxu0 0
      %1353 = vmatprep.subr.bf16.mxu0 0
      %1354 = vmatpush2.bf16.msra.mxu0 0
      %1355 = vmatprep.subr.bf16.mxu0 0
      %1356 = vmatpush2.bf16.msra.mxu0 0
      %1357 = vmatprep.subr.bf16.mxu0 0
      %1358 = vmatpush2.bf16.msra.mxu0 0
      %1359 = vmatprep.subr.bf16.mxu0 0
      %1360 = vmatpush2.bf16.msra.mxu0 0
      %1361 = vmatprep.subr.bf16.mxu0 0
      %1362 = vmatpush2.bf16.msra.mxu0 0
      %1363 = vmatprep.subr.bf16.mxu0 0
      %1364 = vmatpush2.bf16.msra.mxu0 0
      %1365 = vmatprep.subr.bf16.mxu0 0
      %1366 = vmatpush2.bf16.msra.mxu0 0
      %1367 = vmatprep.mubr.bf16.mxu0 0
      %1368 = vmatmul.mubr.bf16.gmra.mxu0 %v1297
      %v1369 = vpop.f32.mrf.mxu0
      %v1370 = vadd.f32 0.0, %v1369
      %v1371 = vpop.f32.mrf.mxu0
      %v1372 = vpop.f32.mrf.mxu0
      %v1373 = vadd.f32 0.0, %v1372
      %v1374 = vpop.f32.mrf.mxu0
      %1375 = vmatprep.mubr.bf16.mxu0 0
      %1376 = vmatmul.mubr.bf16.gmra.mxu0 %v1300
      %v1377 = vpop.f32.mrf.mxu0
      %v1378 = vadd.f32 0.0, %v1377
      %v1379 = vpop.f32.mrf.mxu0
      %v1380 = vpop.f32.mrf.mxu0
      %v1381 = vadd.f32 0.0, %v1380
      %v1382 = vpop.f32.mrf.mxu0
      %1383 = vmatprep.mubr.bf16.mxu0 0
      %1384 = vmatmul.mubr.bf16.gmra.mxu0 %v1303
      %v1385 = vpop.f32.mrf.mxu0
      %v1386 = vadd.f32 0.0, %v1385
      %v1387 = vpop.f32.mrf.mxu0
      %v1388 = vpop.f32.mrf.mxu0
      %v1389 = vadd.f32 0.0, %v1388
      %v1390 = vpop.f32.mrf.mxu0
      %1391 = vmatprep.mubr.bf16.mxu0 0
      %1392 = vmatmul.mubr.bf16.gmra.mxu0 %v1306
      %v1393 = vpop.f32.mrf.mxu0
      %v1394 = vadd.f32 0.0, %v1393
      %v1395 = vpop.f32.mrf.mxu0
      %v1396 = vpop.f32.mrf.mxu0
      %v1397 = vadd.f32 0.0, %v1396
      %v1398 = vpop.f32.mrf.mxu0
      %1399 = vmatprep.mubr.bf16.mxu0 0
      %1400 = vmatmul.mubr.bf16.gmra.mxu0 %v1309
      %v1401 = vpop.f32.mrf.mxu0
      %v1402 = vadd.f32 0.0, %v1401
      %v1403 = vpop.f32.mrf.mxu0
      %v1404 = vpop.f32.mrf.mxu0
      %v1405 = vadd.f32 0.0, %v1404
      %v1406 = vpop.f32.mrf.mxu0
      %1407 = vmatprep.mubr.bf16.mxu0 0
      %1408 = vmatmul.mubr.bf16.gmra.mxu0 %v1312
      %v1409 = vpop.f32.mrf.mxu0
      %v1410 = vadd.f32 0.0, %v1409
      %v1411 = vpop.f32.mrf.mxu0
      %v1412 = vpop.f32.mrf.mxu0
      %v1413 = vadd.f32 0.0, %v1412
      %v1414 = vpop.f32.mrf.mxu0
      %1415 = vmatprep.mubr.bf16.mxu0 0
      %1416 = vmatmul.mubr.bf16.gmra.mxu0 %v1315
      %v1417 = vpop.f32.mrf.mxu0
      %v1418 = vadd.f32 0.0, %v1417
      %v1419 = vpop.f32.mrf.mxu0
      %v1420 = vpop.f32.mrf.mxu0
      %v1421 = vadd.f32 0.0, %v1420
      %v1422 = vpop.f32.mrf.mxu0
      %1423 = vmatprep.mubr.bf16.mxu0 0
      %1424 = vmatmul.mubr.bf16.gmra.mxu0 %v1318
      %v1425 = vpop.f32.mrf.mxu0
      %v1426 = vadd.f32 0.0, %v1425
      %v1427 = vpop.f32.mrf.mxu0
      %v1428 = vpop.f32.mrf.mxu0
      %v1429 = vadd.f32 0.0, %v1428
      %v1430 = vpop.f32.mrf.mxu0
      %1431 = vmatprep.mubr.bf16.mxu0 0
      %1432 = vmatmul.mubr.bf16.gmra.mxu0 %v1321
      %v1433 = vpop.f32.mrf.mxu0
      %v1434 = vadd.f32 0.0, %v1433
      %v1435 = vpop.f32.mrf.mxu0
      %v1436 = vpop.f32.mrf.mxu0
      %v1437 = vadd.f32 0.0, %v1436
      %v1438 = vpop.f32.mrf.mxu0
      %1439 = vmatprep.mubr.bf16.mxu0 0
      %1440 = vmatmul.mubr.bf16.gmra.mxu0 %v1324
      %v1441 = vpop.f32.mrf.mxu0
      %v1442 = vadd.f32 0.0, %v1441
      %v1443 = vpop.f32.mrf.mxu0
      %v1444 = vpop.f32.mrf.mxu0
      %v1445 = vadd.f32 0.0, %v1444
      %v1446 = vpop.f32.mrf.mxu0
      %1447 = vmatprep.mubr.bf16.mxu0 0
      %1448 = vmatmul.mubr.bf16.gmra.mxu0 %v1327
      %v1449 = vpop.f32.mrf.mxu0
      %v1450 = vadd.f32 0.0, %v1449
      %v1451 = vpop.f32.mrf.mxu0
      %v1452 = vpop.f32.mrf.mxu0
      %v1453 = vadd.f32 0.0, %v1452
      %v1454 = vpop.f32.mrf.mxu0
      %1455 = vmatprep.mubr.bf16.mxu0 0
      %1456 = vmatmul.mubr.bf16.gmra.mxu0 %v1330
      %v1457 = vpop.f32.mrf.mxu0
      %v1458 = vadd.f32 0.0, %v1457
      %v1459 = vpop.f32.mrf.mxu0
      %v1460 = vpop.f32.mrf.mxu0
      %v1461 = vadd.f32 0.0, %v1460
      %v1462 = vpop.f32.mrf.mxu0
      %1463 = vmatprep.mubr.bf16.mxu0 0
      %1464 = vmatmul.mubr.bf16.gmra.mxu0 %v1333
      %v1465 = vpop.f32.mrf.mxu0
      %v1466 = vadd.f32 0.0, %v1465
      %v1467 = vpop.f32.mrf.mxu0
      %v1468 = vpop.f32.mrf.mxu0
      %v1469 = vpop.f32.mrf.mxu0
      %1470 = vdwg.mxu0
      %v1471 = vmax.f32 %v1183, %v1370
      %v1472 = vmax.f32 %v1184, %v1373
      %v1473 = vmax.f32 %v1185, %v1378
      %v1474 = vmax.f32 %v1186, %v1381
      %v1475 = vmax.f32 %v1187, %v1386
      %v1476 = vmax.f32 %v1188, %v1389
      %v1477 = vmax.f32 %v1189, %v1394
      %v1478 = vmax.f32 %v1190, %v1397
      %v1479 = vmax.f32 %v1191, %v1402
      %v1480 = vmax.f32 %v1192, %v1405
      %v1481 = vmax.f32 %v1193, %v1410
      %v1482 = vmax.f32 %v1194, %v1413
      %v1483 = vmax.f32 %v1195, %v1418
      %v1484 = vmax.f32 %v1196, %v1421
      %v1485 = vmax.f32 %v1197, %v1426
      %v1486 = vmax.f32 %v1198, %v1429
      %v1487 = vmax.f32 %v1199, %v1434
      %v1488 = vmax.f32 %v1200, %v1437
      %v1489 = vmax.f32 %v1201, %v1442
      %v1490 = vmax.f32 %v1202, %v1445
      %v1491 = vmax.f32 %v1203, %v1450
      %v1492 = vmax.f32 %v1204, %v1453
      %v1493 = vmax.f32 %v1205, %v1458
      %v1494 = vmax.f32 %v1206, %v1461
      %v1495 = vmax.f32 %v1207, %v1466
      %v1496 = vld [vmem:[%s5] sm:$0x1]
      %v1498 = vlaneseq
      %v1499 = vshrl.u32 %v1498, 7
      %v1500 = vsub.s32 0, %v1499
      %v1501 = vrot.slane %v1496, %v1500
      %v1503 = vadd.f32 %v1471, %v1501
      %v1504 = vadd.f32 %v1472, %v1501
      %v1505 = vadd.f32 %v1473, %v1501
      %v1506 = vadd.f32 %v1474, %v1501
      %v1507 = vadd.f32 %v1475, %v1501
      %v1508 = vadd.f32 %v1476, %v1501
      %v1509 = vadd.f32 %v1477, %v1501
      %v1510 = vadd.f32 %v1478, %v1501
      %v1511 = vadd.f32 %v1479, %v1501
      %v1512 = vadd.f32 %v1480, %v1501
      %v1513 = vadd.f32 %v1481, %v1501
      %v1514 = vadd.f32 %v1482, %v1501
      %v1515 = vadd.f32 %v1483, %v1501
      %v1516 = vadd.f32 %v1484, %v1501
      %v1517 = vadd.f32 %v1485, %v1501
      %v1518 = vadd.f32 %v1486, %v1501
      %v1519 = vadd.f32 %v1487, %v1501
      %v1520 = vadd.f32 %v1488, %v1501
      %v1521 = vadd.f32 %v1489, %v1501
      %v1522 = vadd.f32 %v1490, %v1501
      %v1523 = vadd.f32 %v1491, %v1501
      %v1524 = vadd.f32 %v1492, %v1501
      %v1525 = vadd.f32 %v1493, %v1501
      %v1526 = vadd.f32 %v1494, %v1501
      %v1527 = vadd.f32 %v1495, %v1501
      %v1528 = vmax.f32 %v1503, 0.0
      %v1529 = vmax.f32 %v1504, 0.0
      %v1530 = vmax.f32 %v1505, 0.0
      %v1531 = vmax.f32 %v1506, 0.0
      %v1532 = vmax.f32 %v1507, 0.0
      %v1533 = vmax.f32 %v1508, 0.0
      %v1534 = vmax.f32 %v1509, 0.0
      %v1535 = vmax.f32 %v1510, 0.0
      %v1536 = vmax.f32 %v1511, 0.0
      %v1537 = vmax.f32 %v1512, 0.0
      %v1538 = vmax.f32 %v1513, 0.0
      %v1539 = vmax.f32 %v1514, 0.0
      %v1540 = vmax.f32 %v1515, 0.0
      %v1541 = vmax.f32 %v1516, 0.0
      %v1542 = vmax.f32 %v1517, 0.0
      %v1543 = vmax.f32 %v1518, 0.0
      %v1544 = vmax.f32 %v1519, 0.0
      %v1545 = vmax.f32 %v1520, 0.0
      %v1546 = vmax.f32 %v1521, 0.0
      %v1547 = vmax.f32 %v1522, 0.0
      %v1548 = vmax.f32 %v1523, 0.0
      %v1549 = vmax.f32 %v1524, 0.0
      %v1550 = vmax.f32 %v1525, 0.0
      %v1551 = vmax.f32 %v1526, 0.0
      %v1552 = vmax.f32 %v1527, 0.0
      %vm1553 = vcmask 64512
      %1554 = vst.msk [vmem:[%s319] sm:$0xff] %vm1553, %v1528
      %1555 = vst.msk [vmem:[%s319 + $0x8] sm:$0xff] %vm1553, %v1529
      %1556 = vst.msk [vmem:[%s319 + $0x10] sm:$0xff] %vm1553, %v1530
      %1557 = vst.msk [vmem:[%s319 + $0x18] sm:$0xff] %vm1553, %v1531
      %1558 = vst.msk [vmem:[%s319 + $0x20] sm:$0xff] %vm1553, %v1532
      %1559 = vst.msk [vmem:[%s319 + $0x28] sm:$0xff] %vm1553, %v1533
      %1560 = vst.msk [vmem:[%s319 + $0x30] sm:$0xff] %vm1553, %v1534
      %1561 = vst.msk [vmem:[%s319 + $0x38] sm:$0xff] %vm1553, %v1535
      %1562 = vst.msk [vmem:[%s319 + $0x40] sm:$0xff] %vm1553, %v1536
      %1563 = vst.msk [vmem:[%s319 + $0x48] sm:$0xff] %vm1553, %v1537
      %1564 = vst.msk [vmem:[%s319 + $0x50] sm:$0xff] %vm1553, %v1538
      %1565 = vst.msk [vmem:[%s319 + $0x58] sm:$0xff] %vm1553, %v1539
      %1566 = vst.msk [vmem:[%s319 + $0x60] sm:$0xff] %vm1553, %v1540
      %1567 = vst.msk [vmem:[%s319 + $0x68] sm:$0xff] %vm1553, %v1541
      %1568 = vst.msk [vmem:[%s319 + $0x70] sm:$0xff] %vm1553, %v1542
      %1569 = vst.msk [vmem:[%s319 + $0x78] sm:$0xff] %vm1553, %v1543
      %1570 = vst.msk [vmem:[%s319 + $0x80] sm:$0xff] %vm1553, %v1544
      %1571 = vst.msk [vmem:[%s319 + $0x88] sm:$0xff] %vm1553, %v1545
      %1572 = vst.msk [vmem:[%s319 + $0x90] sm:$0xff] %vm1553, %v1546
      %1573 = vst.msk [vmem:[%s319 + $0x98] sm:$0xff] %vm1553, %v1547
      %1574 = vst.msk [vmem:[%s319 + $0xa0] sm:$0xff] %vm1553, %v1548
      %1575 = vst.msk [vmem:[%s319 + $0xa8] sm:$0xff] %vm1553, %v1549
      %1576 = vst.msk [vmem:[%s319 + $0xb0] sm:$0xff] %vm1553, %v1550
      %1577 = vst.msk [vmem:[%s319 + $0xb8] sm:$0xff] %vm1553, %v1551
      %1578 = vst.msk [vmem:[%s319 + $0xc0] sm:$0xff] %vm1553, %v1552
      %s1579 = smul.u32 25, %s17
      %p1580 = scmp.lt.s32.totalorder %s1579, 49
      %s1581 = scalar_select %p1580, %s1579, 49
      %s1582 = smul.addr %s1581, 8
      %s1583 = scalar_lea.vmem %s6, %s1582
      // Predicated region
      $region45: #{simple_cnn_forward.3} parent=43 // pred_check
        %p1584 = pneg %p181
      $region46: #{simple_cnn_forward.3} parent=43 // pred_check_branch
        %1586 = sbr.rel (%p1584) target = $region48
      $region47: #{simple_cnn_forward.3} parent=43 // pred_region
        %s1587 = smul.u32 25, %s17
      $region48: #{simple_cnn_forward.3} parent=43 // pred_fallthru
        _
    $region44: #{simple_cnn_forward.3} parent=5 // pred_fallthru
      _
    %p1588 = scmp.le.s32.totalorder 2, %s12
    // Predicated region
    $region49: #{simple_cnn_forward.3} parent=5 // pred_check
      %p1589 = pneg %p1588
    $region50: #{simple_cnn_forward.3} parent=5 // pred_check_branch
      %1591 = sbr.rel (%p1589) target = $region52
    $region51: #{simple_cnn_forward.3} parent=5 // pred_region
      %s1592 = ssub.s32 %s12, 2
      // Predicated region
      $region53: #{simple_cnn_forward.3} parent=51 // pred_check
        %p1593 = pneg %p187
      $region54: #{simple_cnn_forward.3} parent=51 // pred_check_branch
        %1595 = sbr.rel (%p1593) target = $region56
      $region55: #{simple_cnn_forward.3} parent=51 // pred_region
        %s1596 = smul.u32 25, %s18
        %p1597 = scmp.lt.s32.totalorder %s1596, 49
        %s1598 = scalar_select %p1597, %s1596, 49
        %s1599 = smul.addr %s1598, 8
        %s1600 = scalar_lea.vmem %s6, %s1599
      $region56: #{simple_cnn_forward.3} parent=51 // pred_fallthru
        _
    $region52: #{simple_cnn_forward.3} parent=5 // pred_fallthru
      _
  $region6: #{simple_cnn_forward.3} parent=0 // loop_footer
    %s16 = sadd.s32 1, %s12
  $region7: #{simple_cnn_forward.3} parent=0 // loop_footer_branch
    %11 = sbr.rel target = $region3
  $region8: #{simple_cnn_forward.3} parent=0 // loop_exit
    _

// kernel: simple_cnn_forward.4
$region0: #{simple_cnn_forward.4}
  #allocation0 [shape = 'u32[]', space=smem, size = 0x4, offset = 0x4, fixed_abs, tag = 'smem constant byte address 0x4 - core index']
  #allocation1 [shape = 'u32[144,128]{1,0:T(1,128)}', space=vmem, size = 0x12000, scoped, tag = 'internal scratch']
  %s0 = inlined_call_operand.vmem [shape: bf16[64,150], index: 0, kind: input, shape index: {}]
  %s1 = inlined_call_operand.vmem [shape: bf16[64,150], index: 1, kind: input, shape index: {}]
  %s2 = inlined_call_operand.vmem [shape: bf16[64,150], index: 2, kind: input, shape index: {}]
  %s3 = inlined_call_operand.vmem [shape: bf16[64,150], index: 3, kind: input, shape index: {}]
  %s4 = inlined_call_operand.vmem [shape: bf16[150,16], index: 4, kind: input, shape index: {}]
  %s5 = inlined_call_operand.vmem [shape: f32[1,16], index: 5, kind: input, shape index: {}]
  %s6 = inlined_call_operand.vmem [shape: f32[64,16], index: 6, kind: output, shape index: {}]
  %s7 = sld [smem:[#allocation0]]
  $region57: #{simple_cnn_forward.4} parent=0
    _
  %s9 = ssub.s32 1, %s7
  %s10 = scalar_select 0, %s9, %s7
  loop: start=0, step=1, limit=4
  $region2: #{simple_cnn_forward.4} parent=0 // loop_pre_header
    _
  $region3: #{simple_cnn_forward.4} parent=0 // loop_header
    %s12 = sphi 0, %s16
    %p13 = scmp.ge.s32.totalorder %s12, 4
    %s22 = sphi 0, %s24
    %s25 = sphi 0, %s22
    %s26 = sphi 0, %s25
    %s42 = sphi 0, %s26
    %s48 = sphi 0, %s50
    %s51 = sphi 0, %s48
    %s52 = sphi 0, %s51
    %s68 = sphi 0, %s52
    %s74 = sphi 0, %s76
    %s77 = sphi 0, %s74
    %s78 = sphi 0, %s77
    %s94 = sphi 0, %s78
    %s100 = sphi 0, %s102
    %s103 = sphi 0, %s100
    %s104 = sphi 0, %s103
    %s120 = sphi 0, %s104
    %s124 = sphi 0, %s124
    %s126 = sphi 0, %s124
    %s127 = sphi 0, %s126
    %s141 = sphi 0, %s127
    %s145 = sphi 0, %s145
    %s147 = sphi 0, %s145
    %s148 = sphi 0, %s147
    %s162 = sphi 0, %s148
    %s168 = sphi 0, %s170
    %s171 = sphi 0, %s168
    %s172 = sphi 0, %s171
    %s188 = sphi 0, %s172
  $region4: #{simple_cnn_forward.4} parent=0 // loop_header_branch
    %15 = sbr.rel (%p13) target = $region8
  $region5: #{simple_cnn_forward.4} parent=0 // loop_body
    %s17 = ssub.s32 %s12, 1
    %s18 = ssub.s32 %s12, 2
    %s19 = sadd.s32 %s12, 1
    %s20 = ssub.s32 %s12, %s19
    %p21 = scmp.eq.s32.totalorder %s20, 0
    %s23 = sadd.s32 %s22, 1
    %s24 = scalar_select %p21, %s22, %s23
    %p27 = pneg %p21
    %p28 = scmp.eq.s32.totalorder %s12, 1
    %p29 = por %p27, %p28
    %p30 = scmp.ne.s32.totalorder %s22, %s25
    %p31 = scmp.eq.s32.totalorder %s12, 0
    %p32 = por %p30, %p31
    %p33 = scmp.ne.s32.totalorder %s22, %s25
    %p34 = scmp.eq.s32.totalorder %s17, 1
    %p35 = por %p33, %p34
    %p36 = scmp.ne.s32.totalorder %s25, %s26
    %p37 = scmp.eq.s32.totalorder %s17, 0
    %p38 = por %p36, %p37
    %p39 = scmp.ne.s32.totalorder %s25, %s26
    %p40 = scmp.eq.s32.totalorder %s18, 1
    %p41 = por %p39, %p40
    %p43 = scmp.ne.s32.totalorder %s26, %s42
    %p44 = scmp.eq.s32.totalorder %s18, 0
    %p45 = por %p43, %p44
    %s46 = ssub.s32 %s12, %s19
    %p47 = scmp.eq.s32.totalorder %s46, 0
    %s49 = sadd.s32 %s48, 1
    %s50 = scalar_select %p47, %s48, %s49
    %p53 = pneg %p47
    %p54 = scmp.eq.s32.totalorder %s12, 1
    %p55 = por %p53, %p54
    %p56 = scmp.ne.s32.totalorder %s48, %s51
    %p57 = scmp.eq.s32.totalorder %s12, 0
    %p58 = por %p56, %p57
    %p59 = scmp.ne.s32.totalorder %s48, %s51
    %p60 = scmp.eq.s32.totalorder %s17, 1
    %p61 = por %p59, %p60
    %p62 = scmp.ne.s32.totalorder %s51, %s52
    %p63 = scmp.eq.s32.totalorder %s17, 0
    %p64 = por %p62, %p63
    %p65 = scmp.ne.s32.totalorder %s51, %s52
    %p66 = scmp.eq.s32.totalorder %s18, 1
    %p67 = por %p65, %p66
    %p69 = scmp.ne.s32.totalorder %s52, %s68
    %p70 = scmp.eq.s32.totalorder %s18, 0
    %p71 = por %p69, %p70
    %s72 = ssub.s32 %s12, %s19
    %p73 = scmp.eq.s32.totalorder %s72, 0
    %s75 = sadd.s32 %s74, 1
    %s76 = scalar_select %p73, %s74, %s75
    %p79 = pneg %p73
    %p80 = scmp.eq.s32.totalorder %s12, 1
    %p81 = por %p79, %p80
    %p82 = scmp.ne.s32.totalorder %s74, %s77
    %p83 = scmp.eq.s32.totalorder %s12, 0
    %p84 = por %p82, %p83
    %p85 = scmp.ne.s32.totalorder %s74, %s77
    %p86 = scmp.eq.s32.totalorder %s17, 1
    %p87 = por %p85, %p86
    %p88 = scmp.ne.s32.totalorder %s77, %s78
    %p89 = scmp.eq.s32.totalorder %s17, 0
    %p90 = por %p88, %p89
    %p91 = scmp.ne.s32.totalorder %s77, %s78
    %p92 = scmp.eq.s32.totalorder %s18, 1
    %p93 = por %p91, %p92
    %p95 = scmp.ne.s32.totalorder %s78, %s94
    %p96 = scmp.eq.s32.totalorder %s18, 0
    %p97 = por %p95, %p96
    %s98 = ssub.s32 %s12, %s19
    %p99 = scmp.eq.s32.totalorder %s98, 0
    %s101 = sadd.s32 %s100, 1
    %s102 = scalar_select %p99, %s100, %s101
    %p105 = pneg %p99
    %p106 = scmp.eq.s32.totalorder %s12, 1
    %p107 = por %p105, %p106
    %p108 = scmp.ne.s32.totalorder %s100, %s103
    %p109 = scmp.eq.s32.totalorder %s12, 0
    %p110 = por %p108, %p109
    %p111 = scmp.ne.s32.totalorder %s100, %s103
    %p112 = scmp.eq.s32.totalorder %s17, 1
    %p113 = por %p111, %p112
    %p114 = scmp.ne.s32.totalorder %s103, %s104
    %p115 = scmp.eq.s32.totalorder %s17, 0
    %p116 = por %p114, %p115
    %p117 = scmp.ne.s32.totalorder %s103, %s104
    %p118 = scmp.eq.s32.totalorder %s18, 1
    %p119 = por %p117, %p118
    %p121 = scmp.ne.s32.totalorder %s104, %s120
    %p122 = scmp.eq.s32.totalorder %s18, 0
    %p123 = por %p121, %p122
    %s125 = sadd.s32 %s124, 1
    %p128 = scmp.eq.s32.totalorder %s12, 1
    %p129 = scmp.ne.s32.totalorder %s124, %s126
    %p130 = scmp.eq.s32.totalorder %s12, 0
    %p131 = por %p129, %p130
    %p132 = scmp.ne.s32.totalorder %s124, %s126
    %p133 = scmp.eq.s32.totalorder %s17, 1
    %p134 = por %p132, %p133
    %p135 = scmp.ne.s32.totalorder %s126, %s127
    %p136 = scmp.eq.s32.totalorder %s17, 0
    %p137 = por %p135, %p136
    %p138 = scmp.ne.s32.totalorder %s126, %s127
    %p139 = scmp.eq.s32.totalorder %s18, 1
    %p140 = por %p138, %p139
    %p142 = scmp.ne.s32.totalorder %s127, %s141
    %p143 = scmp.eq.s32.totalorder %s18, 0
    %p144 = por %p142, %p143
    %s146 = sadd.s32 %s145, 1
    %p149 = scmp.eq.s32.totalorder %s12, 1
    %p150 = scmp.ne.s32.totalorder %s145, %s147
    %p151 = scmp.eq.s32.totalorder %s12, 0
    %p152 = por %p150, %p151
    %p153 = scmp.ne.s32.totalorder %s145, %s147
    %p154 = scmp.eq.s32.totalorder %s17, 1
    %p155 = por %p153, %p154
    %p156 = scmp.ne.s32.totalorder %s147, %s148
    %p157 = scmp.eq.s32.totalorder %s17, 0
    %p158 = por %p156, %p157
    %p159 = scmp.ne.s32.totalorder %s147, %s148
    %p160 = scmp.eq.s32.totalorder %s18, 1
    %p161 = por %p159, %p160
    %p163 = scmp.ne.s32.totalorder %s148, %s162
    %p164 = scmp.eq.s32.totalorder %s18, 0
    %p165 = por %p163, %p164
    %s166 = ssub.s32 %s12, %s19
    %p167 = scmp.eq.s32.totalorder %s166, 0
    %s169 = sadd.s32 %s168, 1
    %s170 = scalar_select %p167, %s168, %s169
    %p173 = pneg %p167
    %p174 = scmp.eq.s32.totalorder %s12, 1
    %p175 = por %p173, %p174
    %p176 = scmp.ne.s32.totalorder %s168, %s171
    %p177 = scmp.eq.s32.totalorder %s12, 0
    %p178 = por %p176, %p177
    %p179 = scmp.ne.s32.totalorder %s168, %s171
    %p180 = scmp.eq.s32.totalorder %s17, 1
    %p181 = por %p179, %p180
    %p182 = scmp.ne.s32.totalorder %s171, %s172
    %p183 = scmp.eq.s32.totalorder %s17, 0
    %p184 = por %p182, %p183
    %p185 = scmp.ne.s32.totalorder %s171, %s172
    %p186 = scmp.eq.s32.totalorder %s18, 1
    %p187 = por %p185, %p186
    %p189 = scmp.ne.s32.totalorder %s172, %s188
    %p190 = scmp.eq.s32.totalorder %s18, 0
    %p191 = por %p189, %p190
    %p192 = scmp.le.s32.totalorder 1, %s12
    %p193 = scmp.lt.s32.totalorder %s12, 3
    %p194 = pnand %p192, %p193
    %p195 = pneg %p194
    // Predicated region
    $region9: #{simple_cnn_forward.4} parent=5 // pred_check
      _
    $region10: #{simple_cnn_forward.4} parent=5 // pred_check_branch
      %197 = sbr.rel (%p194) target = $region12
    $region11: #{simple_cnn_forward.4} parent=5 // pred_region
      %s198 = ssub.s32 %s12, 1
      // Predicated region
      $region13: #{simple_cnn_forward.4} parent=11 // pred_check
        %p199 = pneg %p137
      $region14: #{simple_cnn_forward.4} parent=11 // pred_check_branch
        %201 = sbr.rel (%p199) target = $region16
      $region15: #{simple_cnn_forward.4} parent=11 // pred_region
        _
      $region16: #{simple_cnn_forward.4} parent=11 // pred_fallthru
        _
      // Predicated region
      $region17: #{simple_cnn_forward.4} parent=11 // pred_check
        %p202 = pneg %p158
      $region18: #{simple_cnn_forward.4} parent=11 // pred_check_branch
        %204 = sbr.rel (%p202) target = $region20
      $region19: #{simple_cnn_forward.4} parent=11 // pred_region
        _
      $region20: #{simple_cnn_forward.4} parent=11 // pred_fallthru
        _
    $region12: #{simple_cnn_forward.4} parent=5 // pred_fallthru
      _
    %p205 = scmp.lt.s32.totalorder %s12, 2
    // Predicated region
    $region21: #{simple_cnn_forward.4} parent=5 // pred_check
      %p206 = pneg %p205
    $region22: #{simple_cnn_forward.4} parent=5 // pred_check_branch
      %208 = sbr.rel (%p206) target = $region24
    $region23: #{simple_cnn_forward.4} parent=5 // pred_region
      // Predicated region
      $region25: #{simple_cnn_forward.4} parent=23 // pred_check
        %p209 = pneg %p32
      $region26: #{simple_cnn_forward.4} parent=23 // pred_check_branch
        %211 = sbr.rel (%p209) target = $region28
      $region27: #{simple_cnn_forward.4} parent=23 // pred_region
        %s212 = smul.u32 4, %s12
        %p213 = scmp.lt.s32.totalorder %s212, 7
        %s214 = scalar_select %p213, %s212, 7
        %s215 = smul.addr %s214, 2
        %s216 = smul.addr %s215, 4
        %s217 = scalar_lea.vmem %s0, %s216
        %s218 = smul.u32 4, %s12
      $region28: #{simple_cnn_forward.4} parent=23 // pred_fallthru
        _
      // Predicated region
      $region29: #{simple_cnn_forward.4} parent=23 // pred_check
        %p219 = pneg %p58
      $region30: #{simple_cnn_forward.4} parent=23 // pred_check_branch
        %221 = sbr.rel (%p219) target = $region32
      $region31: #{simple_cnn_forward.4} parent=23 // pred_region
        %s222 = smul.u32 4, %s12
        %p223 = scmp.lt.s32.totalorder %s222, 7
        %s224 = scalar_select %p223, %s222, 7
        %s225 = smul.addr %s224, 2
        %s226 = smul.addr %s225, 4
        %s227 = scalar_lea.vmem %s1, %s226
        %s228 = smul.u32 4, %s12
      $region32: #{simple_cnn_forward.4} parent=23 // pred_fallthru
        _
      // Predicated region
      $region33: #{simple_cnn_forward.4} parent=23 // pred_check
        %p229 = pneg %p84
      $region34: #{simple_cnn_forward.4} parent=23 // pred_check_branch
        %231 = sbr.rel (%p229) target = $region36
      $region35: #{simple_cnn_forward.4} parent=23 // pred_region
        %s232 = smul.u32 4, %s12
        %p233 = scmp.lt.s32.totalorder %s232, 7
        %s234 = scalar_select %p233, %s232, 7
        %s235 = smul.addr %s234, 2
        %s236 = smul.addr %s235, 4
        %s237 = scalar_lea.vmem %s2, %s236
        %s238 = smul.u32 4, %s12
      $region36: #{simple_cnn_forward.4} parent=23 // pred_fallthru
        _
      // Predicated region
      $region37: #{simple_cnn_forward.4} parent=23 // pred_check
        %p239 = pneg %p110
      $region38: #{simple_cnn_forward.4} parent=23 // pred_check_branch
        %241 = sbr.rel (%p239) target = $region40
      $region39: #{simple_cnn_forward.4} parent=23 // pred_region
        %s242 = smul.u32 4, %s12
        %p243 = scmp.lt.s32.totalorder %s242, 7
        %s244 = scalar_select %p243, %s242, 7
        %s245 = smul.addr %s244, 2
        %s246 = smul.addr %s245, 4
        %s247 = scalar_lea.vmem %s3, %s246
        %s248 = smul.u32 4, %s12
      $region40: #{simple_cnn_forward.4} parent=23 // pred_fallthru
        _
    $region24: #{simple_cnn_forward.4} parent=5 // pred_fallthru
      _
    %p249 = scmp.le.s32.totalorder 1, %s12
    %p250 = scmp.lt.s32.totalorder %s12, 3
    %p251 = pnand %p249, %p250
    %p252 = pneg %p251
    // Predicated region
    $region41: #{simple_cnn_forward.4} parent=5 // pred_check
      _
    $region42: #{simple_cnn_forward.4} parent=5 // pred_check_branch
      %254 = sbr.rel (%p251) target = $region44
    $region43: #{simple_cnn_forward.4} parent=5 // pred_region
      %s255 = ssub.s32 %s12, 1
      %s256 = smul.u32 4, %s17
      %p257 = scmp.lt.s32.totalorder %s256, 7
      %s258 = scalar_select %p257, %s256, 7
      %s259 = smul.addr %s258, 2
      %s260 = smul.addr %s259, 4
      %s261 = scalar_lea.vmem %s0, %s260
      %p262 = pneg %p38
      %p263 = pneg %p35
      %s264 = smul.u32 4, %s17
      %p265 = scmp.lt.s32.totalorder %s264, 7
      %s266 = scalar_select %p265, %s264, 7
      %s267 = smul.addr %s266, 2
      %s268 = smul.addr %s267, 4
      %s269 = scalar_lea.vmem %s1, %s268
      %p270 = pneg %p64
      %p271 = pneg %p61
      %s272 = smul.u32 4, %s17
      %p273 = scmp.lt.s32.totalorder %s272, 7
      %s274 = scalar_select %p273, %s272, 7
      %s275 = smul.addr %s274, 2
      %s276 = smul.addr %s275, 4
      %s277 = scalar_lea.vmem %s2, %s276
      %p278 = pneg %p90
      %p279 = pneg %p87
      %s280 = smul.u32 4, %s17
      %p281 = scmp.lt.s32.totalorder %s280, 7
      %s282 = scalar_select %p281, %s280, 7
      %s283 = smul.addr %s282, 2
      %s284 = smul.addr %s283, 4
      %s285 = scalar_lea.vmem %s3, %s284
      %p286 = pneg %p116
      %p287 = pneg %p113
      %p288 = pneg %p137
      %p289 = pneg %p134
      %p290 = pneg %p158
      %p291 = pneg %p155
      %p292 = pneg %p184
      %p293 = pneg %p181
      %s294 = smul.u32 4, %s17
      %p295 = scmp.lt.s32.totalorder %s294, 7
      %s296 = scalar_select %p295, %s294, 7
      %s297 = smul.addr %s296, 8
      %s298 = scalar_lea.vmem %s6, %s297
      %s299 = smul.u32 4, %s17
      %p300 = scmp.lt.s32.totalorder %s299, 7
      %s301 = scalar_select %p300, %s299, 7
      %s302 = smul.addr %s301, 2
      %s303 = smul.addr %s302, 4
      %s304 = scalar_lea.vmem %s0, %s303
      %s305 = smul.u32 4, %s17
      %s306 = smul.u32 4, %s17
      %p307 = scmp.lt.s32.totalorder %s306, 7
      %s308 = scalar_select %p307, %s306, 7
      %s309 = smul.addr %s308, 2
      %s310 = smul.addr %s309, 4
      %s311 = scalar_lea.vmem %s1, %s310
      %s312 = smul.u32 4, %s17
      %s313 = smul.u32 4, %s17
      %p314 = scmp.lt.s32.totalorder %s313, 7
      %s315 = scalar_select %p314, %s313, 7
      %s316 = smul.addr %s315, 2
      %s317 = smul.addr %s316, 4
      %s318 = scalar_lea.vmem %s2, %s317
      %s319 = smul.u32 4, %s17
      %s320 = smul.u32 4, %s17
      %p321 = scmp.lt.s32.totalorder %s320, 7
      %s322 = scalar_select %p321, %s320, 7
      %s323 = smul.addr %s322, 2
      %s324 = smul.addr %s323, 4
      %s325 = scalar_lea.vmem %s3, %s324
      %s326 = smul.u32 4, %s17
      %s327 = smul.u32 4, %s17
      %p328 = scmp.lt.s32.totalorder %s327, 7
      %s329 = scalar_select %p328, %s327, 7
      %s330 = smul.addr %s329, 8
      %s331 = scalar_lea.vmem %s6, %s330
      %s332 = smul.u32 4, %s17
      %v334 = vld [vmem:[%s4] sm:$0xf]
      %v335 = vld [vmem:[%s4 + $0x4] sm:$0xf]
      %v336 = vld [vmem:[%s4 + $0x8] sm:$0xf]
      %v337 = vld [vmem:[%s4 + $0xc] sm:$0xf]
      %v338 = vld [vmem:[%s4 + $0x10] sm:$0xf]
      %v339 = vld [vmem:[%s4 + $0x14] sm:$0xf]
      %v340 = vld [vmem:[%s4 + $0x18] sm:$0xf]
      %v341 = vld [vmem:[%s4 + $0x1c] sm:$0xf]
      %v342 = vld [vmem:[%s4 + $0x20] sm:$0xf]
      %v343 = vld [vmem:[%s4 + $0x24] sm:$0xf]
      %v344 = vld [vmem:[%s4 + $0x28] sm:$0xf]
      %v345 = vld [vmem:[%s4 + $0x2c] sm:$0xf]
      %v346 = vld [vmem:[%s4 + $0x30] sm:$0xf]
      %v347 = vld [vmem:[%s4 + $0x34] sm:$0xf]
      %v348 = vld [vmem:[%s4 + $0x38] sm:$0xf]
      %v349 = vld [vmem:[%s4 + $0x3c] sm:$0xf]
      %v350 = vld [vmem:[%s4 + $0x40] sm:$0xf]
      %v351 = vld [vmem:[%s4 + $0x44] sm:$0xf]
      %v352 = vld [vmem:[%s4 + $0x48] sm:$0x7]
      %v353 = vld [vmem:[%s304] sm:$0xff]
      %v354 = vld [vmem:[%s304 + $0x8] sm:$0xff]
      %v355 = vld [vmem:[%s304 + $0x10] sm:$0xff]
      %v356 = vld [vmem:[%s304 + $0x18] sm:$0xff]
      %v361 = vunpack.c.l.b16 %v353
      %v362 = vunpack.c.h.b16 %v353
      %v363 = vunpack.c.l.b16 %v354
      %v364 = vunpack.c.h.b16 %v354
      %v365 = vunpack.c.l.b16 %v355
      %v366 = vunpack.c.h.b16 %v355
      %v367 = vunpack.c.l.b16 %v356
      %v368 = vunpack.c.h.b16 %v356
      %v369 = vpack.c.b16 %v363, %v361
      %v370 = vpack.c.b16 %v364, %v362
      %v371 = vpack.c.b16 %v367, %v365
      %v372 = vpack.c.b16 %v368, %v366
      %v394 = vunpack.c.l.b16 %v334
      %v395 = vunpack.c.l.b16 %v335
      %v396 = vunpack.c.l.b16 %v336
      %v397 = vunpack.c.l.b16 %v337
      %v398 = vunpack.c.l.b16 %v338
      %v399 = vunpack.c.l.b16 %v339
      %v400 = vunpack.c.l.b16 %v340
      %v401 = vunpack.c.l.b16 %v341
      %v402 = vunpack.c.l.b16 %v342
      %v403 = vunpack.c.l.b16 %v343
      %v404 = vunpack.c.l.b16 %v344
      %v405 = vunpack.c.l.b16 %v345
      %v406 = vunpack.c.l.b16 %v346
      %v407 = vunpack.c.l.b16 %v347
      %v408 = vunpack.c.l.b16 %v348
      %v409 = vunpack.c.l.b16 %v349
      %v410 = vunpack.c.l.b16 %v350
      %v411 = vunpack.c.l.b16 %v351
      %v412 = vunpack.c.l.b16 %v352
      %v413 = vpack.c.b16 %v395, %v394
      %v414 = vpack.c.b16 %v397, %v396
      %v415 = vpack.c.b16 %v399, %v398
      %v416 = vpack.c.b16 %v401, %v400
      %v417 = vpack.c.b16 %v403, %v402
      %v418 = vpack.c.b16 %v405, %v404
      %v419 = vpack.c.b16 %v407, %v406
      %v420 = vpack.c.b16 %v409, %v408
      %v421 = vpack.c.b16 %v411, %v410
      %v422 = vpack.c.b16 %v412, %v412
      %vm432 = vcmask 179200
      %v434 = vsel %vm432, %v370, 0
      %v437 = vsel %vm432, %v372, 0
      %vm439 = vcmask 1042432
      %v441 = vsel %vm439, %v422, 0
      %443 = vmatprep.subr.bf16.mxu0 0
      %444 = vmatpush1.bf16.msra.mxu0 %v420
      %445 = vmatprep.subr.bf16.mxu0 0
      %446 = vmatpush1.bf16.msra.mxu0 %v419
      %447 = vmatprep.subr.bf16.mxu0 0
      %448 = vmatpush1.bf16.msra.mxu0 %v418
      %449 = vmatprep.subr.bf16.mxu0 0
      %450 = vmatpush1.bf16.msra.mxu0 %v417
      %451 = vmatprep.subr.bf16.mxu0 0
      %452 = vmatpush1.bf16.msra.mxu0 %v416
      %453 = vmatprep.subr.bf16.mxu0 0
      %454 = vmatpush1.bf16.msra.mxu0 %v415
      %455 = vmatprep.subr.bf16.mxu0 0
      %456 = vmatpush1.bf16.msra.mxu0 %v414
      %457 = vmatprep.subr.bf16.mxu0 0
      %458 = vmatpush1.bf16.msra.mxu0 %v413
      %459 = vmatprep.subr.bf16.mxu0 0
      %460 = vmatpush2.bf16.msra.mxu0 0
      %461 = vmatprep.subr.bf16.mxu0 0
      %462 = vmatpush2.bf16.msra.mxu0 0
      %463 = vmatprep.subr.bf16.mxu0 0
      %464 = vmatpush2.bf16.msra.mxu0 0
      %465 = vmatprep.subr.bf16.mxu0 0
      %466 = vmatpush2.bf16.msra.mxu0 0
      %467 = vmatprep.subr.bf16.mxu0 0
      %468 = vmatpush2.bf16.msra.mxu0 0
      %469 = vmatprep.subr.bf16.mxu0 0
      %470 = vmatpush2.bf16.msra.mxu0 0
      %471 = vmatprep.subr.bf16.mxu0 0
      %472 = vmatpush2.bf16.msra.mxu0 %v441
      %473 = vmatprep.subr.bf16.mxu0 0
      %474 = vmatpush2.bf16.msra.mxu0 %v421
      %475 = vmatprep.mubr.bf16.mxu0 %v434
      %476 = vmatmul.mubr.bf16.gmra.mxu0 %v369
      %v477 = vpop.f32.mrf.mxu0
      %v478 = vadd.f32 0.0, %v477
      %v479 = vpop.f32.mrf.mxu0
      %v480 = vpop.f32.mrf.mxu0
      %v481 = vadd.f32 0.0, %v480
      %v482 = vpop.f32.mrf.mxu0
      %483 = vmatprep.mubr.bf16.mxu0 %v437
      %484 = vmatmul.mubr.bf16.gmra.mxu0 %v371
      %v485 = vpop.f32.mrf.mxu0
      %v486 = vadd.f32 0.0, %v485
      %v487 = vpop.f32.mrf.mxu0
      %v488 = vpop.f32.mrf.mxu0
      %v489 = vadd.f32 0.0, %v488
      %v490 = vpop.f32.mrf.mxu0
      %491 = vdwg.mxu0
      %v492 = vld [vmem:[%s311] sm:$0xff]
      %v493 = vld [vmem:[%s311 + $0x8] sm:$0xff]
      %v494 = vld [vmem:[%s311 + $0x10] sm:$0xff]
      %v495 = vld [vmem:[%s311 + $0x18] sm:$0xff]
      %v500 = vunpack.c.l.b16 %v492
      %v501 = vunpack.c.h.b16 %v492
      %v502 = vunpack.c.l.b16 %v493
      %v503 = vunpack.c.h.b16 %v493
      %v504 = vunpack.c.l.b16 %v494
      %v505 = vunpack.c.h.b16 %v494
      %v506 = vunpack.c.l.b16 %v495
      %v507 = vunpack.c.h.b16 %v495
      %v508 = vpack.c.b16 %v502, %v500
      %v509 = vpack.c.b16 %v503, %v501
      %v510 = vpack.c.b16 %v506, %v504
      %v511 = vpack.c.b16 %v507, %v505
      %v515 = vsel %vm432, %v509, 0
      %v518 = vsel %vm432, %v511, 0
      %520 = vmatprep.subr.bf16.mxu0 0
      %521 = vmatpush1.bf16.msra.mxu0 %v420
      %522 = vmatprep.subr.bf16.mxu0 0
      %523 = vmatpush1.bf16.msra.mxu0 %v419
      %524 = vmatprep.subr.bf16.mxu0 0
      %525 = vmatpush1.bf16.msra.mxu0 %v418
      %526 = vmatprep.subr.bf16.mxu0 0
      %527 = vmatpush1.bf16.msra.mxu0 %v417
      %528 = vmatprep.subr.bf16.mxu0 0
      %529 = vmatpush1.bf16.msra.mxu0 %v416
      %530 = vmatprep.subr.bf16.mxu0 0
      %531 = vmatpush1.bf16.msra.mxu0 %v415
      %532 = vmatprep.subr.bf16.mxu0 0
      %533 = vmatpush1.bf16.msra.mxu0 %v414
      %534 = vmatprep.subr.bf16.mxu0 0
      %535 = vmatpush1.bf16.msra.mxu0 %v413
      %536 = vmatprep.subr.bf16.mxu0 0
      %537 = vmatpush2.bf16.msra.mxu0 0
      %538 = vmatprep.subr.bf16.mxu0 0
      %539 = vmatpush2.bf16.msra.mxu0 0
      %540 = vmatprep.subr.bf16.mxu0 0
      %541 = vmatpush2.bf16.msra.mxu0 0
      %542 = vmatprep.subr.bf16.mxu0 0
      %543 = vmatpush2.bf16.msra.mxu0 0
      %544 = vmatprep.subr.bf16.mxu0 0
      %545 = vmatpush2.bf16.msra.mxu0 0
      %546 = vmatprep.subr.bf16.mxu0 0
      %547 = vmatpush2.bf16.msra.mxu0 0
      %548 = vmatprep.subr.bf16.mxu0 0
      %549 = vmatpush2.bf16.msra.mxu0 %v441
      %550 = vmatprep.subr.bf16.mxu0 0
      %551 = vmatpush2.bf16.msra.mxu0 %v421
      %552 = vmatprep.mubr.bf16.mxu0 %v515
      %553 = vmatmul.mubr.bf16.gmra.mxu0 %v508
      %v554 = vpop.f32.mrf.mxu0
      %v555 = vadd.f32 0.0, %v554
      %v556 = vpop.f32.mrf.mxu0
      %v557 = vpop.f32.mrf.mxu0
      %v558 = vadd.f32 0.0, %v557
      %v559 = vpop.f32.mrf.mxu0
      %560 = vmatprep.mubr.bf16.mxu0 %v518
      %561 = vmatmul.mubr.bf16.gmra.mxu0 %v510
      %v562 = vpop.f32.mrf.mxu0
      %v563 = vadd.f32 0.0, %v562
      %v564 = vpop.f32.mrf.mxu0
      %v565 = vpop.f32.mrf.mxu0
      %v566 = vadd.f32 0.0, %v565
      %v567 = vpop.f32.mrf.mxu0
      %568 = vdwg.mxu0
      %v569 = vmax.f32 %v478, %v555
      %v570 = vmax.f32 %v481, %v558
      %v571 = vmax.f32 %v486, %v563
      %v572 = vmax.f32 %v489, %v566
      %v573 = vld [vmem:[%s318] sm:$0xff]
      %v574 = vld [vmem:[%s318 + $0x8] sm:$0xff]
      %v575 = vld [vmem:[%s318 + $0x10] sm:$0xff]
      %v576 = vld [vmem:[%s318 + $0x18] sm:$0xff]
      %v581 = vunpack.c.l.b16 %v573
      %v582 = vunpack.c.h.b16 %v573
      %v583 = vunpack.c.l.b16 %v574
      %v584 = vunpack.c.h.b16 %v574
      %v585 = vunpack.c.l.b16 %v575
      %v586 = vunpack.c.h.b16 %v575
      %v587 = vunpack.c.l.b16 %v576
      %v588 = vunpack.c.h.b16 %v576
      %v589 = vpack.c.b16 %v583, %v581
      %v590 = vpack.c.b16 %v584, %v582
      %v591 = vpack.c.b16 %v587, %v585
      %v592 = vpack.c.b16 %v588, %v586
      %v596 = vsel %vm432, %v590, 0
      %v599 = vsel %vm432, %v592, 0
      %601 = vmatprep.subr.bf16.mxu0 0
      %602 = vmatpush1.bf16.msra.mxu0 %v420
      %603 = vmatprep.subr.bf16.mxu0 0
      %604 = vmatpush1.bf16.msra.mxu0 %v419
      %605 = vmatprep.subr.bf16.mxu0 0
      %606 = vmatpush1.bf16.msra.mxu0 %v418
      %607 = vmatprep.subr.bf16.mxu0 0
      %608 = vmatpush1.bf16.msra.mxu0 %v417
      %609 = vmatprep.subr.bf16.mxu0 0
      %610 = vmatpush1.bf16.msra.mxu0 %v416
      %611 = vmatprep.subr.bf16.mxu0 0
      %612 = vmatpush1.bf16.msra.mxu0 %v415
      %613 = vmatprep.subr.bf16.mxu0 0
      %614 = vmatpush1.bf16.msra.mxu0 %v414
      %615 = vmatprep.subr.bf16.mxu0 0
      %616 = vmatpush1.bf16.msra.mxu0 %v413
      %617 = vmatprep.subr.bf16.mxu0 0
      %618 = vmatpush2.bf16.msra.mxu0 0
      %619 = vmatprep.subr.bf16.mxu0 0
      %620 = vmatpush2.bf16.msra.mxu0 0
      %621 = vmatprep.subr.bf16.mxu0 0
      %622 = vmatpush2.bf16.msra.mxu0 0
      %623 = vmatprep.subr.bf16.mxu0 0
      %624 = vmatpush2.bf16.msra.mxu0 0
      %625 = vmatprep.subr.bf16.mxu0 0
      %626 = vmatpush2.bf16.msra.mxu0 0
      %627 = vmatprep.subr.bf16.mxu0 0
      %628 = vmatpush2.bf16.msra.mxu0 0
      %629 = vmatprep.subr.bf16.mxu0 0
      %630 = vmatpush2.bf16.msra.mxu0 %v441
      %631 = vmatprep.subr.bf16.mxu0 0
      %632 = vmatpush2.bf16.msra.mxu0 %v421
      %633 = vmatprep.mubr.bf16.mxu0 %v596
      %634 = vmatmul.mubr.bf16.gmra.mxu0 %v589
      %v635 = vpop.f32.mrf.mxu0
      %v636 = vadd.f32 0.0, %v635
      %v637 = vpop.f32.mrf.mxu0
      %v638 = vpop.f32.mrf.mxu0
      %v639 = vadd.f32 0.0, %v638
      %v640 = vpop.f32.mrf.mxu0
      %641 = vmatprep.mubr.bf16.mxu0 %v599
      %642 = vmatmul.mubr.bf16.gmra.mxu0 %v591
      %v643 = vpop.f32.mrf.mxu0
      %v644 = vadd.f32 0.0, %v643
      %v645 = vpop.f32.mrf.mxu0
      %v646 = vpop.f32.mrf.mxu0
      %v647 = vadd.f32 0.0, %v646
      %v648 = vpop.f32.mrf.mxu0
      %649 = vdwg.mxu0
      %v650 = vmax.f32 %v569, %v636
      %v651 = vmax.f32 %v570, %v639
      %v652 = vmax.f32 %v571, %v644
      %v653 = vmax.f32 %v572, %v647
      %v654 = vld [vmem:[%s325] sm:$0xff]
      %v655 = vld [vmem:[%s325 + $0x8] sm:$0xff]
      %v656 = vld [vmem:[%s325 + $0x10] sm:$0xff]
      %v657 = vld [vmem:[%s325 + $0x18] sm:$0xff]
      %v662 = vunpack.c.l.b16 %v654
      %v663 = vunpack.c.h.b16 %v654
      %v664 = vunpack.c.l.b16 %v655
      %v665 = vunpack.c.h.b16 %v655
      %v666 = vunpack.c.l.b16 %v656
      %v667 = vunpack.c.h.b16 %v656
      %v668 = vunpack.c.l.b16 %v657
      %v669 = vunpack.c.h.b16 %v657
      %v670 = vpack.c.b16 %v664, %v662
      %v671 = vpack.c.b16 %v665, %v663
      %v672 = vpack.c.b16 %v668, %v666
      %v673 = vpack.c.b16 %v669, %v667
      %v677 = vsel %vm432, %v671, 0
      %v680 = vsel %vm432, %v673, 0
      %682 = vmatprep.subr.bf16.mxu0 0
      %683 = vmatpush1.bf16.msra.mxu0 %v420
      %684 = vmatprep.subr.bf16.mxu0 0
      %685 = vmatpush1.bf16.msra.mxu0 %v419
      %686 = vmatprep.subr.bf16.mxu0 0
      %687 = vmatpush1.bf16.msra.mxu0 %v418
      %688 = vmatprep.subr.bf16.mxu0 0
      %689 = vmatpush1.bf16.msra.mxu0 %v417
      %690 = vmatprep.subr.bf16.mxu0 0
      %691 = vmatpush1.bf16.msra.mxu0 %v416
      %692 = vmatprep.subr.bf16.mxu0 0
      %693 = vmatpush1.bf16.msra.mxu0 %v415
      %694 = vmatprep.subr.bf16.mxu0 0
      %695 = vmatpush1.bf16.msra.mxu0 %v414
      %696 = vmatprep.subr.bf16.mxu0 0
      %697 = vmatpush1.bf16.msra.mxu0 %v413
      %698 = vmatprep.subr.bf16.mxu0 0
      %699 = vmatpush2.bf16.msra.mxu0 0
      %700 = vmatprep.subr.bf16.mxu0 0
      %701 = vmatpush2.bf16.msra.mxu0 0
      %702 = vmatprep.subr.bf16.mxu0 0
      %703 = vmatpush2.bf16.msra.mxu0 0
      %704 = vmatprep.subr.bf16.mxu0 0
      %705 = vmatpush2.bf16.msra.mxu0 0
      %706 = vmatprep.subr.bf16.mxu0 0
      %707 = vmatpush2.bf16.msra.mxu0 0
      %708 = vmatprep.subr.bf16.mxu0 0
      %709 = vmatpush2.bf16.msra.mxu0 0
      %710 = vmatprep.subr.bf16.mxu0 0
      %711 = vmatpush2.bf16.msra.mxu0 %v441
      %712 = vmatprep.subr.bf16.mxu0 0
      %713 = vmatpush2.bf16.msra.mxu0 %v421
      %714 = vmatprep.mubr.bf16.mxu0 %v677
      %715 = vmatmul.mubr.bf16.gmra.mxu0 %v670
      %v716 = vpop.f32.mrf.mxu0
      %v717 = vadd.f32 0.0, %v716
      %v718 = vpop.f32.mrf.mxu0
      %v719 = vpop.f32.mrf.mxu0
      %v720 = vadd.f32 0.0, %v719
      %v721 = vpop.f32.mrf.mxu0
      %722 = vmatprep.mubr.bf16.mxu0 %v680
      %723 = vmatmul.mubr.bf16.gmra.mxu0 %v672
      %v724 = vpop.f32.mrf.mxu0
      %v725 = vadd.f32 0.0, %v724
      %v726 = vpop.f32.mrf.mxu0
      %v727 = vpop.f32.mrf.mxu0
      %v728 = vadd.f32 0.0, %v727
      %v729 = vpop.f32.mrf.mxu0
      %730 = vdwg.mxu0
      %v731 = vmax.f32 %v650, %v717
      %v732 = vmax.f32 %v651, %v720
      %v733 = vmax.f32 %v652, %v725
      %v734 = vmax.f32 %v653, %v728
      %v735 = vld [vmem:[%s5] sm:$0x1]
      %v737 = vlaneseq
      %v738 = vshrl.u32 %v737, 7
      %v739 = vsub.s32 0, %v738
      %v740 = vrot.slane %v735, %v739
      %v742 = vadd.f32 %v731, %v740
      %v743 = vadd.f32 %v732, %v740
      %v744 = vadd.f32 %v733, %v740
      %v745 = vadd.f32 %v734, %v740
      %v746 = vmax.f32 %v742, 0.0
      %v747 = vmax.f32 %v743, 0.0
      %v748 = vmax.f32 %v744, 0.0
      %v749 = vmax.f32 %v745, 0.0
      %vm750 = vcmask 130048
      %751 = vst.msk [vmem:[%s331] sm:$0xff] %vm750, %v746
      %752 = vst.msk [vmem:[%s331 + $0x8] sm:$0xff] %vm750, %v747
      %753 = vst.msk [vmem:[%s331 + $0x10] sm:$0xff] %vm750, %v748
      %754 = vst.msk [vmem:[%s331 + $0x18] sm:$0xff] %vm750, %v749
      %s755 = smul.u32 4, %s17
      %p756 = scmp.lt.s32.totalorder %s755, 7
      %s757 = scalar_select %p756, %s755, 7
      %s758 = smul.addr %s757, 8
      %s759 = scalar_lea.vmem %s6, %s758
      // Predicated region
      $region45: #{simple_cnn_forward.4} parent=43 // pred_check
        %p760 = pneg %p181
      $region46: #{simple_cnn_forward.4} parent=43 // pred_check_branch
        %762 = sbr.rel (%p760) target = $region48
      $region47: #{simple_cnn_forward.4} parent=43 // pred_region
        %s763 = smul.u32 4, %s17
      $region48: #{simple_cnn_forward.4} parent=43 // pred_fallthru
        _
    $region44: #{simple_cnn_forward.4} parent=5 // pred_fallthru
      _
    %p764 = scmp.le.s32.totalorder 2, %s12
    // Predicated region
    $region49: #{simple_cnn_forward.4} parent=5 // pred_check
      %p765 = pneg %p764
    $region50: #{simple_cnn_forward.4} parent=5 // pred_check_branch
      %767 = sbr.rel (%p765) target = $region52
    $region51: #{simple_cnn_forward.4} parent=5 // pred_region
      %s768 = ssub.s32 %s12, 2
      // Predicated region
      $region53: #{simple_cnn_forward.4} parent=51 // pred_check
        %p769 = pneg %p187
      $region54: #{simple_cnn_forward.4} parent=51 // pred_check_branch
        %771 = sbr.rel (%p769) target = $region56
      $region55: #{simple_cnn_forward.4} parent=51 // pred_region
        %s772 = smul.u32 4, %s18
        %p773 = scmp.lt.s32.totalorder %s772, 7
        %s774 = scalar_select %p773, %s772, 7
        %s775 = smul.addr %s774, 8
        %s776 = scalar_lea.vmem %s6, %s775
      $region56: #{simple_cnn_forward.4} parent=51 // pred_fallthru
        _
    $region52: #{simple_cnn_forward.4} parent=5 // pred_fallthru
      _
  $region6: #{simple_cnn_forward.4} parent=0 // loop_footer
    %s16 = sadd.s32 1, %s12
  $region7: #{simple_cnn_forward.4} parent=0 // loop_footer_branch
    %11 = sbr.rel target = $region3
  $region8: #{simple_cnn_forward.4} parent=0 // loop_exit
    _

// kernel: simple_cnn_forward.5
$region0: #{simple_cnn_forward.5}
  #allocation0 [shape = 'u32[]', space=smem, size = 0x4, offset = 0x4, fixed_abs, tag = 'smem constant byte address 0x4 - core index']
  #allocation1 [shape = 'u32[144,128]{1,0:T(1,128)}', space=vmem, size = 0x12000, scoped, tag = 'internal scratch']
  %s0 = inlined_call_operand.vmem [shape: bf16[8,400], index: 0, kind: input, shape index: {}]
  %s1 = inlined_call_operand.vmem [shape: bf16[400,128], index: 1, kind: input, shape index: {}]
  %s2 = inlined_call_operand.vmem [shape: f32[1,128], index: 2, kind: input, shape index: {}]
  %s3 = inlined_call_operand.vmem [shape: bf16[128,128], index: 3, kind: input, shape index: {}]
  %s4 = inlined_call_operand.vmem [shape: f32[1,128], index: 4, kind: input, shape index: {}]
  %s5 = inlined_call_operand.vmem [shape: bf16[128,128], index: 5, kind: input, shape index: {}]
  %s6 = inlined_call_operand.vmem [shape: f32[1,128], index: 6, kind: input, shape index: {}]
  %s7 = inlined_call_operand.vmem [shape: f32[8,128], index: 7, kind: output, shape index: {}]
  %s8 = sld [smem:[#allocation0]]
  $region38: #{simple_cnn_forward.5} parent=0
    _
  %s10 = ssub.s32 1, %s8
  %s11 = scalar_select 0, %s10, %s8
  // Predicated region
  $region2: #{simple_cnn_forward.5} parent=0 // pred_check
    _
  $region3: #{simple_cnn_forward.5} parent=0 // pred_check_branch
    %13 = sbr.rel (0) target = $region5
  $region4: #{simple_cnn_forward.5} parent=0 // pred_region
    _
  $region5: #{simple_cnn_forward.5} parent=0 // pred_fallthru
    _
  // Predicated region
  $region6: #{simple_cnn_forward.5} parent=0 // pred_check
    _
  $region7: #{simple_cnn_forward.5} parent=0 // pred_check_branch
    %15 = sbr.rel (0) target = $region9
  $region8: #{simple_cnn_forward.5} parent=0 // pred_region
    _
  $region9: #{simple_cnn_forward.5} parent=0 // pred_fallthru
    _
  // Predicated region
  $region10: #{simple_cnn_forward.5} parent=0 // pred_check
    _
  $region11: #{simple_cnn_forward.5} parent=0 // pred_check_branch
    %17 = sbr.rel (0) target = $region13
  $region12: #{simple_cnn_forward.5} parent=0 // pred_region
    _
  $region13: #{simple_cnn_forward.5} parent=0 // pred_fallthru
    _
  // Predicated region
  $region14: #{simple_cnn_forward.5} parent=0 // pred_check
    _
  $region15: #{simple_cnn_forward.5} parent=0 // pred_check_branch
    %19 = sbr.rel (0) target = $region17
  $region16: #{simple_cnn_forward.5} parent=0 // pred_region
    _
  $region17: #{simple_cnn_forward.5} parent=0 // pred_fallthru
    _
  // Predicated region
  $region18: #{simple_cnn_forward.5} parent=0 // pred_check
    _
  $region19: #{simple_cnn_forward.5} parent=0 // pred_check_branch
    %21 = sbr.rel (0) target = $region21
  $region20: #{simple_cnn_forward.5} parent=0 // pred_region
    _
  $region21: #{simple_cnn_forward.5} parent=0 // pred_fallthru
    _
  // Predicated region
  $region22: #{simple_cnn_forward.5} parent=0 // pred_check
    _
  $region23: #{simple_cnn_forward.5} parent=0 // pred_check_branch
    %23 = sbr.rel (0) target = $region25
  $region24: #{simple_cnn_forward.5} parent=0 // pred_region
    _
  $region25: #{simple_cnn_forward.5} parent=0 // pred_fallthru
    _
  // Predicated region
  $region26: #{simple_cnn_forward.5} parent=0 // pred_check
    _
  $region27: #{simple_cnn_forward.5} parent=0 // pred_check_branch
    %25 = sbr.rel (0) target = $region29
  $region28: #{simple_cnn_forward.5} parent=0 // pred_region
    _
  $region29: #{simple_cnn_forward.5} parent=0 // pred_fallthru
    _
  %v27 = vld [vmem:[%s0] sm:$0xff]
  %v28 = vld [vmem:[%s0 + $0x8] sm:$0xff]
  %v29 = vld [vmem:[%s1] sm:$0xf]
  %v30 = vld [vmem:[%s1 + $0x4] sm:$0xf]
  %v31 = vld [vmem:[%s1 + $0x8] sm:$0xf]
  %v32 = vld [vmem:[%s1 + $0xc] sm:$0xf]
  %v33 = vld [vmem:[%s1 + $0x10] sm:$0xf]
  %v34 = vld [vmem:[%s1 + $0x14] sm:$0xf]
  %v35 = vld [vmem:[%s1 + $0x18] sm:$0xf]
  %v36 = vld [vmem:[%s1 + $0x1c] sm:$0xf]
  %v37 = vld [vmem:[%s1 + $0x20] sm:$0xf]
  %v38 = vld [vmem:[%s1 + $0x24] sm:$0xf]
  %v39 = vld [vmem:[%s1 + $0x28] sm:$0xf]
  %v40 = vld [vmem:[%s1 + $0x2c] sm:$0xf]
  %v41 = vld [vmem:[%s1 + $0x30] sm:$0xf]
  %v42 = vld [vmem:[%s1 + $0x34] sm:$0xf]
  %v43 = vld [vmem:[%s1 + $0x38] sm:$0xf]
  %v44 = vld [vmem:[%s1 + $0x3c] sm:$0xf]
  %v45 = vld [vmem:[%s1 + $0x40] sm:$0xf]
  %v46 = vld [vmem:[%s1 + $0x44] sm:$0xf]
  %v47 = vld [vmem:[%s1 + $0x48] sm:$0xf]
  %v48 = vld [vmem:[%s1 + $0x4c] sm:$0xf]
  %v49 = vld [vmem:[%s1 + $0x50] sm:$0xf]
  %v50 = vld [vmem:[%s1 + $0x54] sm:$0xf]
  %v51 = vld [vmem:[%s1 + $0x58] sm:$0xf]
  %v52 = vld [vmem:[%s1 + $0x5c] sm:$0xf]
  %v53 = vld [vmem:[%s1 + $0x60] sm:$0xf]
  %v54 = vld [vmem:[%s1 + $0x64] sm:$0xf]
  %v55 = vld [vmem:[%s1 + $0x68] sm:$0xf]
  %v56 = vld [vmem:[%s1 + $0x6c] sm:$0xf]
  %v57 = vld [vmem:[%s1 + $0x70] sm:$0xf]
  %v58 = vld [vmem:[%s1 + $0x74] sm:$0xf]
  %v59 = vld [vmem:[%s1 + $0x78] sm:$0xf]
  %v60 = vld [vmem:[%s1 + $0x7c] sm:$0xf]
  %v61 = vld [vmem:[%s1 + $0x80] sm:$0xf]
  %v62 = vld [vmem:[%s1 + $0x84] sm:$0xf]
  %v63 = vld [vmem:[%s1 + $0x88] sm:$0xf]
  %v64 = vld [vmem:[%s1 + $0x8c] sm:$0xf]
  %v65 = vld [vmem:[%s1 + $0x90] sm:$0xf]
  %v66 = vld [vmem:[%s1 + $0x94] sm:$0xf]
  %v67 = vld [vmem:[%s1 + $0x98] sm:$0xf]
  %v68 = vld [vmem:[%s1 + $0x9c] sm:$0xf]
  %v69 = vld [vmem:[%s1 + $0xa0] sm:$0xf]
  %v70 = vld [vmem:[%s1 + $0xa4] sm:$0xf]
  %v71 = vld [vmem:[%s1 + $0xa8] sm:$0xf]
  %v72 = vld [vmem:[%s1 + $0xac] sm:$0xf]
  %v73 = vld [vmem:[%s1 + $0xb0] sm:$0xf]
  %v74 = vld [vmem:[%s1 + $0xb4] sm:$0xf]
  %v75 = vld [vmem:[%s1 + $0xb8] sm:$0xf]
  %v76 = vld [vmem:[%s1 + $0xbc] sm:$0xf]
  %v77 = vld [vmem:[%s1 + $0xc0] sm:$0xf]
  %v78 = vld [vmem:[%s1 + $0xc4] sm:$0xf]
  %v79 = vld [vmem:[%s2] sm:$0x1]
  %v81 = vlaneseq
  %v82 = vshrl.u32 %v81, 7
  %v83 = vsub.s32 0, %v82
  %v84 = vrot.slane %v79, %v83
  %v88 = vunpack.c.l.b16 %v27
  %v89 = vunpack.c.h.b16 %v27
  %v90 = vunpack.c.l.b16 %v28
  %v91 = vunpack.c.h.b16 %v28
  %v92 = vpack.c.b16 %v88, %v88
  %v93 = vpack.c.b16 %v89, %v89
  %v94 = vpack.c.b16 %v90, %v90
  %v95 = vpack.c.b16 %v91, %v91
  %v149 = vunpack.c.l.b16 %v29
  %v150 = vunpack.c.l.b16 %v30
  %v151 = vunpack.c.l.b16 %v31
  %v152 = vunpack.c.l.b16 %v32
  %v153 = vunpack.c.l.b16 %v33
  %v154 = vunpack.c.l.b16 %v34
  %v155 = vunpack.c.l.b16 %v35
  %v156 = vunpack.c.l.b16 %v36
  %v157 = vunpack.c.l.b16 %v37
  %v158 = vunpack.c.l.b16 %v38
  %v159 = vunpack.c.l.b16 %v39
  %v160 = vunpack.c.l.b16 %v40
  %v161 = vunpack.c.l.b16 %v41
  %v162 = vunpack.c.l.b16 %v42
  %v163 = vunpack.c.l.b16 %v43
  %v164 = vunpack.c.l.b16 %v44
  %v165 = vunpack.c.l.b16 %v45
  %v166 = vunpack.c.l.b16 %v46
  %v167 = vunpack.c.l.b16 %v47
  %v168 = vunpack.c.l.b16 %v48
  %v169 = vunpack.c.l.b16 %v49
  %v170 = vunpack.c.l.b16 %v50
  %v171 = vunpack.c.l.b16 %v51
  %v172 = vunpack.c.l.b16 %v52
  %v173 = vunpack.c.l.b16 %v53
  %v174 = vunpack.c.l.b16 %v54
  %v175 = vunpack.c.l.b16 %v55
  %v176 = vunpack.c.l.b16 %v56
  %v177 = vunpack.c.l.b16 %v57
  %v178 = vunpack.c.l.b16 %v58
  %v179 = vunpack.c.l.b16 %v59
  %v180 = vunpack.c.l.b16 %v60
  %v181 = vunpack.c.l.b16 %v61
  %v182 = vunpack.c.l.b16 %v62
  %v183 = vunpack.c.l.b16 %v63
  %v184 = vunpack.c.l.b16 %v64
  %v185 = vunpack.c.l.b16 %v65
  %v186 = vunpack.c.l.b16 %v66
  %v187 = vunpack.c.l.b16 %v67
  %v188 = vunpack.c.l.b16 %v68
  %v189 = vunpack.c.l.b16 %v69
  %v190 = vunpack.c.l.b16 %v70
  %v191 = vunpack.c.l.b16 %v71
  %v192 = vunpack.c.l.b16 %v72
  %v193 = vunpack.c.l.b16 %v73
  %v194 = vunpack.c.l.b16 %v74
  %v195 = vunpack.c.l.b16 %v75
  %v196 = vunpack.c.l.b16 %v76
  %v197 = vunpack.c.l.b16 %v77
  %v198 = vunpack.c.l.b16 %v78
  %v199 = vpack.c.b16 %v150, %v149
  %v200 = vpack.c.b16 %v152, %v151
  %v201 = vpack.c.b16 %v154, %v153
  %v202 = vpack.c.b16 %v156, %v155
  %v203 = vpack.c.b16 %v158, %v157
  %v204 = vpack.c.b16 %v160, %v159
  %v205 = vpack.c.b16 %v162, %v161
  %v206 = vpack.c.b16 %v164, %v163
  %v207 = vpack.c.b16 %v166, %v165
  %v208 = vpack.c.b16 %v168, %v167
  %v209 = vpack.c.b16 %v170, %v169
  %v210 = vpack.c.b16 %v172, %v171
  %v211 = vpack.c.b16 %v174, %v173
  %v212 = vpack.c.b16 %v176, %v175
  %v213 = vpack.c.b16 %v178, %v177
  %v214 = vpack.c.b16 %v180, %v179
  %v215 = vpack.c.b16 %v182, %v181
  %v216 = vpack.c.b16 %v184, %v183
  %v217 = vpack.c.b16 %v186, %v185
  %v218 = vpack.c.b16 %v188, %v187
  %v219 = vpack.c.b16 %v190, %v189
  %v220 = vpack.c.b16 %v192, %v191
  %v221 = vpack.c.b16 %v194, %v193
  %v222 = vpack.c.b16 %v196, %v195
  %v223 = vpack.c.b16 %v198, %v197
  %vm249 = vcmask 130048
  %v251 = vsel %vm249, %v95, 0
  %253 = vmatprep.subr.bf16.mxu0 0
  %254 = vmatpush1.bf16.msra.mxu0 %v206
  %255 = vmatprep.subr.bf16.mxu0 0
  %256 = vmatpush1.bf16.msra.mxu0 %v205
  %257 = vmatprep.subr.bf16.mxu0 0
  %258 = vmatpush1.bf16.msra.mxu0 %v204
  %259 = vmatprep.subr.bf16.mxu0 0
  %260 = vmatpush1.bf16.msra.mxu0 %v203
  %261 = vmatprep.subr.bf16.mxu0 0
  %262 = vmatpush1.bf16.msra.mxu0 %v202
  %263 = vmatprep.subr.bf16.mxu0 0
  %264 = vmatpush1.bf16.msra.mxu0 %v201
  %265 = vmatprep.subr.bf16.mxu0 0
  %266 = vmatpush1.bf16.msra.mxu0 %v200
  %267 = vmatprep.subr.bf16.mxu0 0
  %268 = vmatpush1.bf16.msra.mxu0 %v199
  %269 = vmatprep.subr.bf16.mxu0 0
  %270 = vmatpush2.bf16.msra.mxu0 %v214
  %271 = vmatprep.subr.bf16.mxu0 0
  %272 = vmatpush2.bf16.msra.mxu0 %v213
  %273 = vmatprep.subr.bf16.mxu0 0
  %274 = vmatpush2.bf16.msra.mxu0 %v212
  %275 = vmatprep.subr.bf16.mxu0 0
  %276 = vmatpush2.bf16.msra.mxu0 %v211
  %277 = vmatprep.subr.bf16.mxu0 0
  %278 = vmatpush2.bf16.msra.mxu0 %v210
  %279 = vmatprep.subr.bf16.mxu0 0
  %280 = vmatpush2.bf16.msra.mxu0 %v209
  %281 = vmatprep.subr.bf16.mxu0 0
  %282 = vmatpush2.bf16.msra.mxu0 %v208
  %283 = vmatprep.subr.bf16.mxu0 0
  %284 = vmatpush2.bf16.msra.mxu0 %v207
  %285 = vmatprep.mubr.bf16.mxu0 %v93
  %286 = vmatmul.mubr.bf16.gmra.mxu0 %v92
  %v287 = vpop.f32.mrf.mxu0
  %v288 = vadd.f32 %v84, %v287
  %v289 = vpop.f32.mrf.mxu0
  %v290 = vpop.f32.mrf.mxu0
  %v291 = vpop.f32.mrf.mxu0
  %292 = vdwg.mxu0
  %293 = vmatprep.subr.bf16.mxu0 0
  %294 = vmatpush1.bf16.msra.mxu0 %v222
  %295 = vmatprep.subr.bf16.mxu0 0
  %296 = vmatpush1.bf16.msra.mxu0 %v221
  %297 = vmatprep.subr.bf16.mxu0 0
  %298 = vmatpush1.bf16.msra.mxu0 %v220
  %299 = vmatprep.subr.bf16.mxu0 0
  %300 = vmatpush1.bf16.msra.mxu0 %v219
  %301 = vmatprep.subr.bf16.mxu0 0
  %302 = vmatpush1.bf16.msra.mxu0 %v218
  %303 = vmatprep.subr.bf16.mxu0 0
  %304 = vmatpush1.bf16.msra.mxu0 %v217
  %305 = vmatprep.subr.bf16.mxu0 0
  %306 = vmatpush1.bf16.msra.mxu0 %v216
  %307 = vmatprep.subr.bf16.mxu0 0
  %308 = vmatpush1.bf16.msra.mxu0 %v215
  %309 = vmatprep.subr.bf16.mxu0 0
  %310 = vmatpush2.bf16.msra.mxu0 0
  %311 = vmatprep.subr.bf16.mxu0 0
  %312 = vmatpush2.bf16.msra.mxu0 0
  %313 = vmatprep.subr.bf16.mxu0 0
  %314 = vmatpush2.bf16.msra.mxu0 0
  %315 = vmatprep.subr.bf16.mxu0 0
  %316 = vmatpush2.bf16.msra.mxu0 0
  %317 = vmatprep.subr.bf16.mxu0 0
  %318 = vmatpush2.bf16.msra.mxu0 0
  %319 = vmatprep.subr.bf16.mxu0 0
  %320 = vmatpush2.bf16.msra.mxu0 0
  %321 = vmatprep.subr.bf16.mxu0 0
  %322 = vmatpush2.bf16.msra.mxu0 0
  %323 = vmatprep.subr.bf16.mxu0 0
  %324 = vmatpush2.bf16.msra.mxu0 %v223
  %325 = vmatprep.mubr.bf16.mxu0 %v251
  %326 = vmatmul.mubr.bf16.gmra.mxu0 %v94
  %v327 = vpop.f32.mrf.mxu0
  %v328 = vadd.f32 %v288, %v327
  %v329 = vpop.f32.mrf.mxu0
  %v330 = vpop.f32.mrf.mxu0
  %v331 = vpop.f32.mrf.mxu0
  %332 = vdwg.mxu0
  %v333 = vmax.f32 %v328, 0.0
  %v334 = vpack.c.bf16 %v333, %v333
  %v335 = vld [vmem:[%s3] sm:$0xf]
  %v336 = vld [vmem:[%s3 + $0x4] sm:$0xf]
  %v337 = vld [vmem:[%s3 + $0x8] sm:$0xf]
  %v338 = vld [vmem:[%s3 + $0xc] sm:$0xf]
  %v339 = vld [vmem:[%s3 + $0x10] sm:$0xf]
  %v340 = vld [vmem:[%s3 + $0x14] sm:$0xf]
  %v341 = vld [vmem:[%s3 + $0x18] sm:$0xf]
  %v342 = vld [vmem:[%s3 + $0x1c] sm:$0xf]
  %v343 = vld [vmem:[%s3 + $0x20] sm:$0xf]
  %v344 = vld [vmem:[%s3 + $0x24] sm:$0xf]
  %v345 = vld [vmem:[%s3 + $0x28] sm:$0xf]
  %v346 = vld [vmem:[%s3 + $0x2c] sm:$0xf]
  %v347 = vld [vmem:[%s3 + $0x30] sm:$0xf]
  %v348 = vld [vmem:[%s3 + $0x34] sm:$0xf]
  %v349 = vld [vmem:[%s3 + $0x38] sm:$0xf]
  %v350 = vld [vmem:[%s3 + $0x3c] sm:$0xf]
  %v351 = vld [vmem:[%s4] sm:$0x1]
  %v353 = vlaneseq
  %v354 = vshrl.u32 %v353, 7
  %v355 = vsub.s32 0, %v354
  %v356 = vrot.slane %v351, %v355
  %v374 = vunpack.c.l.b16 %v335
  %v375 = vunpack.c.l.b16 %v336
  %v376 = vunpack.c.l.b16 %v337
  %v377 = vunpack.c.l.b16 %v338
  %v378 = vunpack.c.l.b16 %v339
  %v379 = vunpack.c.l.b16 %v340
  %v380 = vunpack.c.l.b16 %v341
  %v381 = vunpack.c.l.b16 %v342
  %v382 = vunpack.c.l.b16 %v343
  %v383 = vunpack.c.l.b16 %v344
  %v384 = vunpack.c.l.b16 %v345
  %v385 = vunpack.c.l.b16 %v346
  %v386 = vunpack.c.l.b16 %v347
  %v387 = vunpack.c.l.b16 %v348
  %v388 = vunpack.c.l.b16 %v349
  %v389 = vunpack.c.l.b16 %v350
  %v390 = vpack.c.b16 %v375, %v374
  %v391 = vpack.c.b16 %v377, %v376
  %v392 = vpack.c.b16 %v379, %v378
  %v393 = vpack.c.b16 %v381, %v380
  %v394 = vpack.c.b16 %v383, %v382
  %v395 = vpack.c.b16 %v385, %v384
  %v396 = vpack.c.b16 %v387, %v386
  %v397 = vpack.c.b16 %v389, %v388
  %406 = vmatprep.subr.bf16.mxu0 0
  %407 = vmatpush1.bf16.msra.mxu0 %v397
  %408 = vmatprep.subr.bf16.mxu0 0
  %409 = vmatpush1.bf16.msra.mxu0 %v396
  %410 = vmatprep.subr.bf16.mxu0 0
  %411 = vmatpush1.bf16.msra.mxu0 %v395
  %412 = vmatprep.subr.bf16.mxu0 0
  %413 = vmatpush1.bf16.msra.mxu0 %v394
  %414 = vmatprep.subr.bf16.mxu0 0
  %415 = vmatpush1.bf16.msra.mxu0 %v393
  %416 = vmatprep.subr.bf16.mxu0 0
  %417 = vmatpush1.bf16.msra.mxu0 %v392
  %418 = vmatprep.subr.bf16.mxu0 0
  %419 = vmatpush1.bf16.msra.mxu0 %v391
  %420 = vmatprep.subr.bf16.mxu0 0
  %421 = vmatpush1.bf16.msra.mxu0 %v390
  %422 = vmatprep.subr.bf16.mxu0 0
  %423 = vmatpush2.bf16.msra.mxu0 0
  %424 = vmatprep.subr.bf16.mxu0 0
  %425 = vmatpush2.bf16.msra.mxu0 0
  %426 = vmatprep.subr.bf16.mxu0 0
  %427 = vmatpush2.bf16.msra.mxu0 0
  %428 = vmatprep.subr.bf16.mxu0 0
  %429 = vmatpush2.bf16.msra.mxu0 0
  %430 = vmatprep.subr.bf16.mxu0 0
  %431 = vmatpush2.bf16.msra.mxu0 0
  %432 = vmatprep.subr.bf16.mxu0 0
  %433 = vmatpush2.bf16.msra.mxu0 0
  %434 = vmatprep.subr.bf16.mxu0 0
  %435 = vmatpush2.bf16.msra.mxu0 0
  %436 = vmatprep.subr.bf16.mxu0 0
  %437 = vmatpush2.bf16.msra.mxu0 0
  %438 = vmatprep.mubr.bf16.mxu0 0
  %439 = vmatmul.mubr.bf16.gmra.mxu0 %v334
  %v440 = vpop.f32.mrf.mxu0
  %v441 = vadd.f32 %v356, %v440
  %v442 = vpop.f32.mrf.mxu0
  %v443 = vpop.f32.mrf.mxu0
  %v444 = vpop.f32.mrf.mxu0
  %445 = vdwg.mxu0
  %v446 = vmax.f32 %v441, 0.0
  %v447 = vpack.c.bf16 %v446, %v446
  %v448 = vld [vmem:[%s5] sm:$0xf]
  %v449 = vld [vmem:[%s5 + $0x4] sm:$0xf]
  %v450 = vld [vmem:[%s5 + $0x8] sm:$0xf]
  %v451 = vld [vmem:[%s5 + $0xc] sm:$0xf]
  %v452 = vld [vmem:[%s5 + $0x10] sm:$0xf]
  %v453 = vld [vmem:[%s5 + $0x14] sm:$0xf]
  %v454 = vld [vmem:[%s5 + $0x18] sm:$0xf]
  %v455 = vld [vmem:[%s5 + $0x1c] sm:$0xf]
  %v456 = vld [vmem:[%s5 + $0x20] sm:$0xf]
  %v457 = vld [vmem:[%s5 + $0x24] sm:$0xf]
  %v458 = vld [vmem:[%s5 + $0x28] sm:$0xf]
  %v459 = vld [vmem:[%s5 + $0x2c] sm:$0xf]
  %v460 = vld [vmem:[%s5 + $0x30] sm:$0xf]
  %v461 = vld [vmem:[%s5 + $0x34] sm:$0xf]
  %v462 = vld [vmem:[%s5 + $0x38] sm:$0xf]
  %v463 = vld [vmem:[%s5 + $0x3c] sm:$0xf]
  %v464 = vld [vmem:[%s6] sm:$0x1]
  %v466 = vlaneseq
  %v467 = vshrl.u32 %v466, 7
  %v468 = vsub.s32 0, %v467
  %v469 = vrot.slane %v464, %v468
  %v487 = vunpack.c.l.b16 %v448
  %v488 = vunpack.c.l.b16 %v449
  %v489 = vunpack.c.l.b16 %v450
  %v490 = vunpack.c.l.b16 %v451
  %v491 = vunpack.c.l.b16 %v452
  %v492 = vunpack.c.l.b16 %v453
  %v493 = vunpack.c.l.b16 %v454
  %v494 = vunpack.c.l.b16 %v455
  %v495 = vunpack.c.l.b16 %v456
  %v496 = vunpack.c.l.b16 %v457
  %v497 = vunpack.c.l.b16 %v458
  %v498 = vunpack.c.l.b16 %v459
  %v499 = vunpack.c.l.b16 %v460
  %v500 = vunpack.c.l.b16 %v461
  %v501 = vunpack.c.l.b16 %v462
  %v502 = vunpack.c.l.b16 %v463
  %v503 = vpack.c.b16 %v488, %v487
  %v504 = vpack.c.b16 %v490, %v489
  %v505 = vpack.c.b16 %v492, %v491
  %v506 = vpack.c.b16 %v494, %v493
  %v507 = vpack.c.b16 %v496, %v495
  %v508 = vpack.c.b16 %v498, %v497
  %v509 = vpack.c.b16 %v500, %v499
  %v510 = vpack.c.b16 %v502, %v501
  %519 = vmatprep.subr.bf16.mxu0 0
  %520 = vmatpush1.bf16.msra.mxu0 %v510
  %521 = vmatprep.subr.bf16.mxu0 0
  %522 = vmatpush1.bf16.msra.mxu0 %v509
  %523 = vmatprep.subr.bf16.mxu0 0
  %524 = vmatpush1.bf16.msra.mxu0 %v508
  %525 = vmatprep.subr.bf16.mxu0 0
  %526 = vmatpush1.bf16.msra.mxu0 %v507
  %527 = vmatprep.subr.bf16.mxu0 0
  %528 = vmatpush1.bf16.msra.mxu0 %v506
  %529 = vmatprep.subr.bf16.mxu0 0
  %530 = vmatpush1.bf16.msra.mxu0 %v505
  %531 = vmatprep.subr.bf16.mxu0 0
  %532 = vmatpush1.bf16.msra.mxu0 %v504
  %533 = vmatprep.subr.bf16.mxu0 0
  %534 = vmatpush1.bf16.msra.mxu0 %v503
  %535 = vmatprep.subr.bf16.mxu0 0
  %536 = vmatpush2.bf16.msra.mxu0 0
  %537 = vmatprep.subr.bf16.mxu0 0
  %538 = vmatpush2.bf16.msra.mxu0 0
  %539 = vmatprep.subr.bf16.mxu0 0
  %540 = vmatpush2.bf16.msra.mxu0 0
  %541 = vmatprep.subr.bf16.mxu0 0
  %542 = vmatpush2.bf16.msra.mxu0 0
  %543 = vmatprep.subr.bf16.mxu0 0
  %544 = vmatpush2.bf16.msra.mxu0 0
  %545 = vmatprep.subr.bf16.mxu0 0
  %546 = vmatpush2.bf16.msra.mxu0 0
  %547 = vmatprep.subr.bf16.mxu0 0
  %548 = vmatpush2.bf16.msra.mxu0 0
  %549 = vmatprep.subr.bf16.mxu0 0
  %550 = vmatpush2.bf16.msra.mxu0 0
  %551 = vmatprep.mubr.bf16.mxu0 0
  %552 = vmatmul.mubr.bf16.gmra.mxu0 %v447
  %v553 = vpop.f32.mrf.mxu0
  %v554 = vadd.f32 %v469, %v553
  %v555 = vpop.f32.mrf.mxu0
  %v556 = vpop.f32.mrf.mxu0
  %v557 = vpop.f32.mrf.mxu0
  %558 = vdwg.mxu0
  %559 = vst [vmem:[%s7] sm:$0xff] %v554
  // Predicated region
  $region30: #{simple_cnn_forward.5} parent=0 // pred_check
    _
  $region31: #{simple_cnn_forward.5} parent=0 // pred_check_branch
    %561 = sbr.rel (0) target = $region33
  $region32: #{simple_cnn_forward.5} parent=0 // pred_region
    _
  $region33: #{simple_cnn_forward.5} parent=0 // pred_fallthru
    _
  // Predicated region
  $region34: #{simple_cnn_forward.5} parent=0 // pred_check
    _
  $region35: #{simple_cnn_forward.5} parent=0 // pred_check_branch
    %563 = sbr.rel (0) target = $region37
  $region36: #{simple_cnn_forward.5} parent=0 // pred_region
    _
  $region37: #{simple_cnn_forward.5} parent=0 // pred_fallthru
    _

</llo_original>
